<compile_context>
chip_gen: v6e
topology: v6e:2x2x1
jax: 0.10.0
libtpu: 0.0.40
codegen_flags: <defaults>
</compile_context>

<pallas_src>
import functools
import math

import jax
import jax.numpy as jnp
from jax.experimental import pallas as pl
from jax.experimental.pallas import tpu as pltpu

INPUT_SIZE = 86
HIDDEN_SIZE = 32
OUTPUT_SIZE = 1


def _lstm_recurrent_kernel(gates_ref, whh_ref, wfc_ref, bfc_ref, out_ref,
                           h_scr, c_scr, *, t_block, t_total, single_chunk):
    """One grid step = one (Tb*B, 4H) chunk of precomputed gate pre-activations.

    h/c are carried in vregs across the Tb inner steps; when there is more than
    one chunk they persist in VMEM scratch across the sequential grid axis.
    """
    chunk = pl.program_id(0)
    B, H = h_scr.shape

    if single_chunk:
        # grid == (1,): no scratch round-trips, no init branch.
        h = jnp.zeros((B, H), jnp.float32)
        c = jnp.zeros((B, H), jnp.float32)
    else:
        @pl.when(chunk == 0)
        def _():
            h_scr[...] = jnp.zeros_like(h_scr)
            c_scr[...] = jnp.zeros_like(c_scr)
            out_ref[...] = jnp.zeros_like(out_ref)   # never returned uninit
        h = h_scr[...]
        c = c_scr[...]

    whh = whh_ref[...]                               # (H, 4H), loaded once per chunk
    # TODO(synk): hold W_hh^T in MXU weight staging registers across the Tb
    # serial steps (pltpu.matmul_push_rhs / matmul_acc_lhs / matmul_pop) to take
    # the per-step weight push off the latency-bound dependency chain.

    # Lane mask for the g-gate block [2H, 3H) and a hoisted scale tile so a
    # SINGLE full-(B,4H)-tile tanh covers all four gates:
    #   sigmoid(x) = 0.5 * (1 + tanh(x / 2)).
    lane = jax.lax.broadcasted_iota(jnp.int32, (B, 4 * H), 1)
    is_g = jnp.logical_and(lane >= 2 * H, lane < 3 * H)
    scale = jnp.where(is_g, jnp.float32(1.0), jnp.float32(0.5))

    needs_mask = (t_total % t_block) != 0            # static Python bool

    for k in range(t_block):                         # static -> zero-cost slices
        # Recurrent part only: the x-projection was hoisted into gates_ref.
        pre = gates_ref[k * B:(k + 1) * B, :] + jnp.dot(
            h, whh, preferred_element_type=jnp.float32)
        t = jnp.tanh(pre * scale)                    # one EUP pass per step
        act = jnp.where(is_g, t, 0.5 * t + 0.5)
        # TODO(synk): pltpu.roll-based lane alignment of i/f/g/o to run the
        # elementwise chain on whole 128-lane tiles instead of 32-lane slices.
        i_g = act[:, 0 * H:1 * H]
        f_g = act[:, 1 * H:2 * H]
        g_g = act[:, 2 * H:3 * H]
        o_g = act[:, 3 * H:4 * H]
        c_new = f_g * c + i_g * g_g
        h_new = o_g * jnp.tanh(c_new)
        if needs_mask:
            valid = (chunk * t_block + k) < t_total
            h_new = jnp.where(valid, h_new, h)
            c_new = jnp.where(valid, c_new, c)
        h, c = h_new, c_new

    if not single_chunk:
        h_scr[...] = h
        c_scr[...] = c

    @pl.when(chunk == pl.num_programs(0) - 1)
    def _():
        # Final FC (H -> 1) + sigmoid as a VPU multiply + lane reduction
        # (avoids an N=1 MXU matmul in the epilogue).
        logits = jnp.sum(h * wfc_ref[...], axis=-1, keepdims=True) + bfc_ref[...]
        out_ref[...] = jax.nn.sigmoid(logits)


@functools.partial(jax.jit, static_argnames=("time_block",))
def port_state_lstm_forward(x, w_ih, w_hh, b_ih, b_hh, w_fc, b_fc,
                            time_block=64):
    """x: (B, T, input_size) float32.  Returns sigmoid(FC(h_T)): (B, 1)."""
    B, T, D = x.shape
    H = w_hh.shape[1]

    # ---- Time chunking.  Tb = min(time_block, T); ragged tails are padded and
    # masked (no gcd -> Tb=1 cliff).  When num_chunks > 1 the per-chunk gate
    # block is (Tb*B, 4H), so keep Tb*B a multiple of 8 (sublane rule).
    Tb = min(time_block, T)
    num_chunks = pl.cdiv(T, Tb)
    if num_chunks > 1:
        sub = 8 // math.gcd(B, 8)
        Tb = -(-Tb // sub) * sub
        num_chunks = pl.cdiv(T, Tb)
    T_pad = num_chunks * Tb

    # ---- Hoisted input projection: one big matmul over all (T*B) rows,
    # outside the serial recurrence, emitted time-major then flattened to a
    # dense 2-D (T*B, 4H) layout (sublane-dense chunks, no (2,128) padding).
    bias = (b_ih + b_hh).astype(jnp.float32)
    gates = jnp.einsum("btd,gd->tbg", x, w_ih,
                       preferred_element_type=jnp.float32) + bias   # (T, B, 4H)
    gates = gates.reshape(T * B, 4 * H)
    if T_pad != T:
        gates = jnp.pad(gates, ((0, (T_pad - T) * B), (0, 0)))
    # TODO(synk): for large T*B, fuse this projection into the kernel (stream x
    # chunks + one MXU matmul per chunk) to avoid the HBM round trip of the
    # gates tensor, and run it in bf16 with f32 accumulation / D padded to 128.

    whh_t = jnp.transpose(w_hh, (1, 0))          # (H, 4H)
    wfc_row = w_fc.reshape(1, H)                 # (1, H) FC weights as a row
    bfc = b_fc.reshape(1, OUTPUT_SIZE)           # (1, 1)

    kernel = functools.partial(
        _lstm_recurrent_kernel,
        t_block=Tb, t_total=T, single_chunk=(num_chunks == 1))

    # TODO(synk): on v7x, add a leading "parallel" batch-group grid axis (with
    # per-group h/c scratch) so the second TensorCore is not idle when there
    # are independent sequences to shard.
    out = pl.pallas_call(
        kernel,
        out_shape=jax.ShapeDtypeStruct((B, OUTPUT_SIZE), jnp.float32),
        grid_spec=pltpu.PrefetchScalarGridSpec(
            num_scalar_prefetch=0,
            grid=(num_chunks,),
            in_specs=[
                pl.BlockSpec((Tb * B, 4 * H), lambda t: (t, 0)),      # gate chunk
                pl.BlockSpec((H, 4 * H), lambda t: (0, 0)),           # W_hh^T
                pl.BlockSpec((1, H), lambda t: (0, 0)),               # W_fc row
                pl.BlockSpec((1, OUTPUT_SIZE), lambda t: (0, 0)),     # b_fc
            ],
            out_specs=pl.BlockSpec((B, OUTPUT_SIZE), lambda t: (0, 0)),
            scratch_shapes=[
                pltpu.VMEM((B, H), jnp.float32),   # h state (across chunks)
                pltpu.VMEM((B, H), jnp.float32),   # c state
            ],
        ),
        compiler_params=pltpu.CompilerParams(
            dimension_semantics=("arbitrary",)),   # recurrence is sequential
    )(gates, whh_t, wfc_row, bfc)
    return out


def _reference_forward(x, w_ih, w_hh, b_ih, b_hh, w_fc, b_fc):
    """Pure-JAX reference mimicking torch.nn.LSTM + Linear + Sigmoid."""
    B, T, D = x.shape
    H = w_hh.shape[1]

    def step(carry, x_t):
        h, c = carry
        gates = x_t @ w_ih.T + h @ w_hh.T + b_ih + b_hh
        i_g = jax.nn.sigmoid(gates[:, 0 * H:1 * H])
        f_g = jax.nn.sigmoid(gates[:, 1 * H:2 * H])
        g_g = jnp.tanh(gates[:, 2 * H:3 * H])
        o_g = jax.nn.sigmoid(gates[:, 3 * H:4 * H])
        c_new = f_g * c + i_g * g_g
        h_new = o_g * jnp.tanh(c_new)
        return (h_new, c_new), h_new

    h0 = jnp.zeros((B, H), jnp.float32)
    c0 = jnp.zeros((B, H), jnp.float32)
    (h_T, _), _ = jax.lax.scan(step, (h0, c0), jnp.transpose(x, (1, 0, 2)))
    return jax.nn.sigmoid(h_T @ w_fc.T + b_fc)


if __name__ == "__main__":
    B, T = 2, 16
    D, H, O = INPUT_SIZE, HIDDEN_SIZE, OUTPUT_SIZE

    key = jax.random.PRNGKey(0)
    ks = jax.random.split(key, 7)
    bound = 1.0 / jnp.sqrt(jnp.float32(H))

    # PyTorch-style uniform(-1/sqrt(H), 1/sqrt(H)) init, deterministic.
    w_ih = jax.random.uniform(ks[0], (4 * H, D), jnp.float32, -bound, bound)
    w_hh = jax.random.uniform(ks[1], (4 * H, H), jnp.float32, -bound, bound)
    b_ih = jax.random.uniform(ks[2], (4 * H,), jnp.float32, -bound, bound)
    b_hh = jax.random.uniform(ks[3], (4 * H,), jnp.float32, -bound, bound)
    w_fc = jax.random.uniform(ks[4], (O, H), jnp.float32, -bound, bound)
    b_fc = jax.random.uniform(ks[5], (O,), jnp.float32, -bound, bound)

    x = jax.random.normal(ks[6], (B, T, D), jnp.float32)

    out = port_state_lstm_forward(x, w_ih, w_hh, b_ih, b_hh, w_fc, b_fc)
    out = jax.block_until_ready(out)

    ref = _reference_forward(x, w_ih, w_hh, b_ih, b_hh, w_fc, b_fc)
    assert out.shape == (B, O)
    assert jnp.allclose(out, ref, atol=1e-5, rtol=1e-5), (out, ref)

    print("KERNEL_OK")
</pallas_src>

<mosaic_0001>
module attributes {stable_mosaic.version = 11 : i64} {
  func.func @_lstm_recurrent_kernel(%arg0: i32, %arg1: memref<32x128xf32, #tpu.memory_space<vmem>>, %arg2: memref<32x128xf32, #tpu.memory_space<vmem>>, %arg3: memref<1x32xf32, #tpu.memory_space<vmem>>, %arg4: memref<1x1xf32, #tpu.memory_space<vmem>>, %arg5: memref<2x1xf32, #tpu.memory_space<vmem>>, %arg6: memref<2x32xf32, #tpu.memory_space<vmem>>, %arg7: memref<2x32xf32, #tpu.memory_space<vmem>>) attributes {dimension_semantics = [#tpu.dimension_semantics<arbitrary>], iteration_bounds = array<i64: 1>, scalar_prefetch = 0 : i64, scratch_operands = 2 : i64, tpu.core_type = #tpu.core_type<tc>, window_params = [{transform_indices = @transform_0, window_bounds = array<i64: 32, 128>}, {pipeline_mode = #tpu.pipeline_mode<synchronous>, transform_indices = @transform_1, window_bounds = array<i64: 32, 128>}, {pipeline_mode = #tpu.pipeline_mode<synchronous>, transform_indices = @transform_2, window_bounds = array<i64: 1, 32>}, {pipeline_mode = #tpu.pipeline_mode<synchronous>, transform_indices = @transform_3, window_bounds = array<i64: 1, 1>}, {pipeline_mode = #tpu.pipeline_mode<synchronous>, transform_indices = @transform_4, window_bounds = array<i64: 2, 1>}]} {
    %cst = arith.constant 0.000000e+00 : f32
    %0 = vector.broadcast %cst : f32 to vector<2x32xf32>
    %cst_0 = arith.constant 0.000000e+00 : f32
    %1 = vector.broadcast %cst_0 : f32 to vector<2x32xf32>
    %c0 = arith.constant 0 : index
    %c0_1 = arith.constant 0 : index
    %2 = vector.load %arg2[%c0, %c0_1] : memref<32x128xf32, #tpu.memory_space<vmem>>, vector<32x128xf32>
    %3 = tpu.iota {dimensions = array<i32: 1>} : vector<2x128xi32>
    %c64_i32 = arith.constant 64 : i32
    %4 = vector.broadcast %c64_i32 : i32 to vector<2x128xi32>
    %5 = arith.cmpi sge, %3, %4 : vector<2x128xi32>
    %c96_i32 = arith.constant 96 : i32
    %6 = vector.broadcast %c96_i32 : i32 to vector<2x128xi32>
    %7 = arith.cmpi slt, %3, %6 : vector<2x128xi32>
    %8 = arith.andi %5, %7 : vector<2x128xi1>
    %cst_2 = arith.constant 1.000000e+00 : f32
    %cst_3 = arith.constant 5.000000e-01 : f32
    %9 = vector.broadcast %cst_2 : f32 to vector<2x128xf32>
    %10 = vector.broadcast %cst_3 : f32 to vector<2x128xf32>
    %11 = arith.select %8, %9, %10 : vector<2x128xi1>, vector<2x128xf32>
    %c0_4 = arith.constant 0 : index
    %c0_5 = arith.constant 0 : index
    %12 = vector.load %arg1[%c0_4, %c0_5] : memref<32x128xf32, #tpu.memory_space<vmem>>, vector<2x128xf32>
    %cst_6 = arith.constant dense<0.000000e+00> : vector<2x128xf32>
    %13 = tpu.matmul %0, %2, %cst_6 {dimension_numbers = #tpu.dot_dimension_numbers<[1], [0], [0], [1], [0, 0, 1, 1], [], []>} : vector<2x32xf32>, vector<32x128xf32>, vector<2x128xf32> -> vector<2x128xf32>
    %14 = arith.addf %12, %13 : vector<2x128xf32>
    %15 = arith.mulf %14, %11 : vector<2x128xf32>
    %16 = math.tanh %15 : vector<2x128xf32>
    %cst_7 = arith.constant 5.000000e-01 : f32
    %17 = vector.broadcast %cst_7 : f32 to vector<2x128xf32>
    %18 = arith.mulf %17, %16 : vector<2x128xf32>
    %cst_8 = arith.constant 5.000000e-01 : f32
    %19 = vector.broadcast %cst_8 : f32 to vector<2x128xf32>
    %20 = arith.addf %18, %19 : vector<2x128xf32>
    %21 = arith.select %8, %16, %20 : vector<2x128xi1>, vector<2x128xf32>
    %22 = vector.extract_strided_slice %21 {offsets = [0, 0], sizes = [2, 32], strides = [1, 1]} : vector<2x128xf32> to vector<2x32xf32>
    %23 = vector.extract_strided_slice %21 {offsets = [0, 32], sizes = [2, 32], strides = [1, 1]} : vector<2x128xf32> to vector<2x32xf32>
    %24 = vector.extract_strided_slice %21 {offsets = [0, 64], sizes = [2, 32], strides = [1, 1]} : vector<2x128xf32> to vector<2x32xf32>
    %25 = vector.extract_strided_slice %21 {offsets = [0, 96], sizes = [2, 32], strides = [1, 1]} : vector<2x128xf32> to vector<2x32xf32>
    %26 = arith.mulf %23, %1 : vector<2x32xf32>
    %27 = arith.mulf %22, %24 : vector<2x32xf32>
    %28 = arith.addf %26, %27 : vector<2x32xf32>
    %29 = math.tanh %28 : vector<2x32xf32>
    %30 = arith.mulf %25, %29 : vector<2x32xf32>
    %c2 = arith.constant 2 : index
    %c0_9 = arith.constant 0 : index
    %31 = vector.load %arg1[%c2, %c0_9] : memref<32x128xf32, #tpu.memory_space<vmem>>, vector<2x128xf32>
    %cst_10 = arith.constant dense<0.000000e+00> : vector<2x128xf32>
    %32 = tpu.matmul %30, %2, %cst_10 {dimension_numbers = #tpu.dot_dimension_numbers<[1], [0], [0], [1], [0, 0, 1, 1], [], []>} : vector<2x32xf32>, vector<32x128xf32>, vector<2x128xf32> -> vector<2x128xf32>
    %33 = arith.addf %31, %32 : vector<2x128xf32>
    %34 = arith.mulf %33, %11 : vector<2x128xf32>
    %35 = math.tanh %34 : vector<2x128xf32>
    %cst_11 = arith.constant 5.000000e-01 : f32
    %36 = vector.broadcast %cst_11 : f32 to vector<2x128xf32>
    %37 = arith.mulf %36, %35 : vector<2x128xf32>
    %cst_12 = arith.constant 5.000000e-01 : f32
    %38 = vector.broadcast %cst_12 : f32 to vector<2x128xf32>
    %39 = arith.addf %37, %38 : vector<2x128xf32>
    %40 = arith.select %8, %35, %39 : vector<2x128xi1>, vector<2x128xf32>
    %41 = vector.extract_strided_slice %40 {offsets = [0, 0], sizes = [2, 32], strides = [1, 1]} : vector<2x128xf32> to vector<2x32xf32>
    %42 = vector.extract_strided_slice %40 {offsets = [0, 32], sizes = [2, 32], strides = [1, 1]} : vector<2x128xf32> to vector<2x32xf32>
    %43 = vector.extract_strided_slice %40 {offsets = [0, 64], sizes = [2, 32], strides = [1, 1]} : vector<2x128xf32> to vector<2x32xf32>
    %44 = vector.extract_strided_slice %40 {offsets = [0, 96], sizes = [2, 32], strides = [1, 1]} : vector<2x128xf32> to vector<2x32xf32>
    %45 = arith.mulf %42, %28 : vector<2x32xf32>
    %46 = arith.mulf %41, %43 : vector<2x32xf32>
    %47 = arith.addf %45, %46 : vector<2x32xf32>
    %48 = math.tanh %47 : vector<2x32xf32>
    %49 = arith.mulf %44, %48 : vector<2x32xf32>
    %c4 = arith.constant 4 : index
    %c0_13 = arith.constant 0 : index
    %50 = vector.load %arg1[%c4, %c0_13] : memref<32x128xf32, #tpu.memory_space<vmem>>, vector<2x128xf32>
    %cst_14 = arith.constant dense<0.000000e+00> : vector<2x128xf32>
    %51 = tpu.matmul %49, %2, %cst_14 {dimension_numbers = #tpu.dot_dimension_numbers<[1], [0], [0], [1], [0, 0, 1, 1], [], []>} : vector<2x32xf32>, vector<32x128xf32>, vector<2x128xf32> -> vector<2x128xf32>
    %52 = arith.addf %50, %51 : vector<2x128xf32>
    %53 = arith.mulf %52, %11 : vector<2x128xf32>
    %54 = math.tanh %53 : vector<2x128xf32>
    %cst_15 = arith.constant 5.000000e-01 : f32
    %55 = vector.broadcast %cst_15 : f32 to vector<2x128xf32>
    %56 = arith.mulf %55, %54 : vector<2x128xf32>
    %cst_16 = arith.constant 5.000000e-01 : f32
    %57 = vector.broadcast %cst_16 : f32 to vector<2x128xf32>
    %58 = arith.addf %56, %57 : vector<2x128xf32>
    %59 = arith.select %8, %54, %58 : vector<2x128xi1>, vector<2x128xf32>
    %60 = vector.extract_strided_slice %59 {offsets = [0, 0], sizes = [2, 32], strides = [1, 1]} : vector<2x128xf32> to vector<2x32xf32>
    %61 = vector.extract_strided_slice %59 {offsets = [0, 32], sizes = [2, 32], strides = [1, 1]} : vector<2x128xf32> to vector<2x32xf32>
    %62 = vector.extract_strided_slice %59 {offsets = [0, 64], sizes = [2, 32], strides = [1, 1]} : vector<2x128xf32> to vector<2x32xf32>
    %63 = vector.extract_strided_slice %59 {offsets = [0, 96], sizes = [2, 32], strides = [1, 1]} : vector<2x128xf32> to vector<2x32xf32>
    %64 = arith.mulf %61, %47 : vector<2x32xf32>
    %65 = arith.mulf %60, %62 : vector<2x32xf32>
    %66 = arith.addf %64, %65 : vector<2x32xf32>
    %67 = math.tanh %66 : vector<2x32xf32>
    %68 = arith.mulf %63, %67 : vector<2x32xf32>
    %c6 = arith.constant 6 : index
    %c0_17 = arith.constant 0 : index
    %69 = vector.load %arg1[%c6, %c0_17] : memref<32x128xf32, #tpu.memory_space<vmem>>, vector<2x128xf32>
    %cst_18 = arith.constant dense<0.000000e+00> : vector<2x128xf32>
    %70 = tpu.matmul %68, %2, %cst_18 {dimension_numbers = #tpu.dot_dimension_numbers<[1], [0], [0], [1], [0, 0, 1, 1], [], []>} : vector<2x32xf32>, vector<32x128xf32>, vector<2x128xf32> -> vector<2x128xf32>
    %71 = arith.addf %69, %70 : vector<2x128xf32>
    %72 = arith.mulf %71, %11 : vector<2x128xf32>
    %73 = math.tanh %72 : vector<2x128xf32>
    %cst_19 = arith.constant 5.000000e-01 : f32
    %74 = vector.broadcast %cst_19 : f32 to vector<2x128xf32>
    %75 = arith.mulf %74, %73 : vector<2x128xf32>
    %cst_20 = arith.constant 5.000000e-01 : f32
    %76 = vector.broadcast %cst_20 : f32 to vector<2x128xf32>
    %77 = arith.addf %75, %76 : vector<2x128xf32>
    %78 = arith.select %8, %73, %77 : vector<2x128xi1>, vector<2x128xf32>
    %79 = vector.extract_strided_slice %78 {offsets = [0, 0], sizes = [2, 32], strides = [1, 1]} : vector<2x128xf32> to vector<2x32xf32>
    %80 = vector.extract_strided_slice %78 {offsets = [0, 32], sizes = [2, 32], strides = [1, 1]} : vector<2x128xf32> to vector<2x32xf32>
    %81 = vector.extract_strided_slice %78 {offsets = [0, 64], sizes = [2, 32], strides = [1, 1]} : vector<2x128xf32> to vector<2x32xf32>
    %82 = vector.extract_strided_slice %78 {offsets = [0, 96], sizes = [2, 32], strides = [1, 1]} : vector<2x128xf32> to vector<2x32xf32>
    %83 = arith.mulf %80, %66 : vector<2x32xf32>
    %84 = arith.mulf %79, %81 : vector<2x32xf32>
    %85 = arith.addf %83, %84 : vector<2x32xf32>
    %86 = math.tanh %85 : vector<2x32xf32>
    %87 = arith.mulf %82, %86 : vector<2x32xf32>
    %c8 = arith.constant 8 : index
    %c0_21 = arith.constant 0 : index
    %88 = vector.load %arg1[%c8, %c0_21] : memref<32x128xf32, #tpu.memory_space<vmem>>, vector<2x128xf32>
    %cst_22 = arith.constant dense<0.000000e+00> : vector<2x128xf32>
    %89 = tpu.matmul %87, %2, %cst_22 {dimension_numbers = #tpu.dot_dimension_numbers<[1], [0], [0], [1], [0, 0, 1, 1], [], []>} : vector<2x32xf32>, vector<32x128xf32>, vector<2x128xf32> -> vector<2x128xf32>
    %90 = arith.addf %88, %89 : vector<2x128xf32>
    %91 = arith.mulf %90, %11 : vector<2x128xf32>
    %92 = math.tanh %91 : vector<2x128xf32>
    %cst_23 = arith.constant 5.000000e-01 : f32
    %93 = vector.broadcast %cst_23 : f32 to vector<2x128xf32>
    %94 = arith.mulf %93, %92 : vector<2x128xf32>
    %cst_24 = arith.constant 5.000000e-01 : f32
    %95 = vector.broadcast %cst_24 : f32 to vector<2x128xf32>
    %96 = arith.addf %94, %95 : vector<2x128xf32>
    %97 = arith.select %8, %92, %96 : vector<2x128xi1>, vector<2x128xf32>
    %98 = vector.extract_strided_slice %97 {offsets = [0, 0], sizes = [2, 32], strides = [1, 1]} : vector<2x128xf32> to vector<2x32xf32>
    %99 = vector.extract_strided_slice %97 {offsets = [0, 32], sizes = [2, 32], strides = [1, 1]} : vector<2x128xf32> to vector<2x32xf32>
    %100 = vector.extract_strided_slice %97 {offsets = [0, 64], sizes = [2, 32], strides = [1, 1]} : vector<2x128xf32> to vector<2x32xf32>
    %101 = vector.extract_strided_slice %97 {offsets = [0, 96], sizes = [2, 32], strides = [1, 1]} : vector<2x128xf32> to vector<2x32xf32>
    %102 = arith.mulf %99, %85 : vector<2x32xf32>
    %103 = arith.mulf %98, %100 : vector<2x32xf32>
    %104 = arith.addf %102, %103 : vector<2x32xf32>
    %105 = math.tanh %104 : vector<2x32xf32>
    %106 = arith.mulf %101, %105 : vector<2x32xf32>
    %c10 = arith.constant 10 : index
    %c0_25 = arith.constant 0 : index
    %107 = vector.load %arg1[%c10, %c0_25] : memref<32x128xf32, #tpu.memory_space<vmem>>, vector<2x128xf32>
    %cst_26 = arith.constant dense<0.000000e+00> : vector<2x128xf32>
    %108 = tpu.matmul %106, %2, %cst_26 {dimension_numbers = #tpu.dot_dimension_numbers<[1], [0], [0], [1], [0, 0, 1, 1], [], []>} : vector<2x32xf32>, vector<32x128xf32>, vector<2x128xf32> -> vector<2x128xf32>
    %109 = arith.addf %107, %108 : vector<2x128xf32>
    %110 = arith.mulf %109, %11 : vector<2x128xf32>
    %111 = math.tanh %110 : vector<2x128xf32>
    %cst_27 = arith.constant 5.000000e-01 : f32
    %112 = vector.broadcast %cst_27 : f32 to vector<2x128xf32>
    %113 = arith.mulf %112, %111 : vector<2x128xf32>
    %cst_28 = arith.constant 5.000000e-01 : f32
    %114 = vector.broadcast %cst_28 : f32 to vector<2x128xf32>
    %115 = arith.addf %113, %114 : vector<2x128xf32>
    %116 = arith.select %8, %111, %115 : vector<2x128xi1>, vector<2x128xf32>
    %117 = vector.extract_strided_slice %116 {offsets = [0, 0], sizes = [2, 32], strides = [1, 1]} : vector<2x128xf32> to vector<2x32xf32>
    %118 = vector.extract_strided_slice %116 {offsets = [0, 32], sizes = [2, 32], strides = [1, 1]} : vector<2x128xf32> to vector<2x32xf32>
    %119 = vector.extract_strided_slice %116 {offsets = [0, 64], sizes = [2, 32], strides = [1, 1]} : vector<2x128xf32> to vector<2x32xf32>
    %120 = vector.extract_strided_slice %116 {offsets = [0, 96], sizes = [2, 32], strides = [1, 1]} : vector<2x128xf32> to vector<2x32xf32>
    %121 = arith.mulf %118, %104 : vector<2x32xf32>
    %122 = arith.mulf %117, %119 : vector<2x32xf32>
    %123 = arith.addf %121, %122 : vector<2x32xf32>
    %124 = math.tanh %123 : vector<2x32xf32>
    %125 = arith.mulf %120, %124 : vector<2x32xf32>
    %c12 = arith.constant 12 : index
    %c0_29 = arith.constant 0 : index
    %126 = vector.load %arg1[%c12, %c0_29] : memref<32x128xf32, #tpu.memory_space<vmem>>, vector<2x128xf32>
    %cst_30 = arith.constant dense<0.000000e+00> : vector<2x128xf32>
    %127 = tpu.matmul %125, %2, %cst_30 {dimension_numbers = #tpu.dot_dimension_numbers<[1], [0], [0], [1], [0, 0, 1, 1], [], []>} : vector<2x32xf32>, vector<32x128xf32>, vector<2x128xf32> -> vector<2x128xf32>
    %128 = arith.addf %126, %127 : vector<2x128xf32>
    %129 = arith.mulf %128, %11 : vector<2x128xf32>
    %130 = math.tanh %129 : vector<2x128xf32>
    %cst_31 = arith.constant 5.000000e-01 : f32
    %131 = vector.broadcast %cst_31 : f32 to vector<2x128xf32>
    %132 = arith.mulf %131, %130 : vector<2x128xf32>
    %cst_32 = arith.constant 5.000000e-01 : f32
    %133 = vector.broadcast %cst_32 : f32 to vector<2x128xf32>
    %134 = arith.addf %132, %133 : vector<2x128xf32>
    %135 = arith.select %8, %130, %134 : vector<2x128xi1>, vector<2x128xf32>
    %136 = vector.extract_strided_slice %135 {offsets = [0, 0], sizes = [2, 32], strides = [1, 1]} : vector<2x128xf32> to vector<2x32xf32>
    %137 = vector.extract_strided_slice %135 {offsets = [0, 32], sizes = [2, 32], strides = [1, 1]} : vector<2x128xf32> to vector<2x32xf32>
    %138 = vector.extract_strided_slice %135 {offsets = [0, 64], sizes = [2, 32], strides = [1, 1]} : vector<2x128xf32> to vector<2x32xf32>
    %139 = vector.extract_strided_slice %135 {offsets = [0, 96], sizes = [2, 32], strides = [1, 1]} : vector<2x128xf32> to vector<2x32xf32>
    %140 = arith.mulf %137, %123 : vector<2x32xf32>
    %141 = arith.mulf %136, %138 : vector<2x32xf32>
    %142 = arith.addf %140, %141 : vector<2x32xf32>
    %143 = math.tanh %142 : vector<2x32xf32>
    %144 = arith.mulf %139, %143 : vector<2x32xf32>
    %c14 = arith.constant 14 : index
    %c0_33 = arith.constant 0 : index
    %145 = vector.load %arg1[%c14, %c0_33] : memref<32x128xf32, #tpu.memory_space<vmem>>, vector<2x128xf32>
    %cst_34 = arith.constant dense<0.000000e+00> : vector<2x128xf32>
    %146 = tpu.matmul %144, %2, %cst_34 {dimension_numbers = #tpu.dot_dimension_numbers<[1], [0], [0], [1], [0, 0, 1, 1], [], []>} : vector<2x32xf32>, vector<32x128xf32>, vector<2x128xf32> -> vector<2x128xf32>
    %147 = arith.addf %145, %146 : vector<2x128xf32>
    %148 = arith.mulf %147, %11 : vector<2x128xf32>
    %149 = math.tanh %148 : vector<2x128xf32>
    %cst_35 = arith.constant 5.000000e-01 : f32
    %150 = vector.broadcast %cst_35 : f32 to vector<2x128xf32>
    %151 = arith.mulf %150, %149 : vector<2x128xf32>
    %cst_36 = arith.constant 5.000000e-01 : f32
    %152 = vector.broadcast %cst_36 : f32 to vector<2x128xf32>
    %153 = arith.addf %151, %152 : vector<2x128xf32>
    %154 = arith.select %8, %149, %153 : vector<2x128xi1>, vector<2x128xf32>
    %155 = vector.extract_strided_slice %154 {offsets = [0, 0], sizes = [2, 32], strides = [1, 1]} : vector<2x128xf32> to vector<2x32xf32>
    %156 = vector.extract_strided_slice %154 {offsets = [0, 32], sizes = [2, 32], strides = [1, 1]} : vector<2x128xf32> to vector<2x32xf32>
    %157 = vector.extract_strided_slice %154 {offsets = [0, 64], sizes = [2, 32], strides = [1, 1]} : vector<2x128xf32> to vector<2x32xf32>
    %158 = vector.extract_strided_slice %154 {offsets = [0, 96], sizes = [2, 32], strides = [1, 1]} : vector<2x128xf32> to vector<2x32xf32>
    %159 = arith.mulf %156, %142 : vector<2x32xf32>
    %160 = arith.mulf %155, %157 : vector<2x32xf32>
    %161 = arith.addf %159, %160 : vector<2x32xf32>
    %162 = math.tanh %161 : vector<2x32xf32>
    %163 = arith.mulf %158, %162 : vector<2x32xf32>
    %c16 = arith.constant 16 : index
    %c0_37 = arith.constant 0 : index
    %164 = vector.load %arg1[%c16, %c0_37] : memref<32x128xf32, #tpu.memory_space<vmem>>, vector<2x128xf32>
    %cst_38 = arith.constant dense<0.000000e+00> : vector<2x128xf32>
    %165 = tpu.matmul %163, %2, %cst_38 {dimension_numbers = #tpu.dot_dimension_numbers<[1], [0], [0], [1], [0, 0, 1, 1], [], []>} : vector<2x32xf32>, vector<32x128xf32>, vector<2x128xf32> -> vector<2x128xf32>
    %166 = arith.addf %164, %165 : vector<2x128xf32>
    %167 = arith.mulf %166, %11 : vector<2x128xf32>
    %168 = math.tanh %167 : vector<2x128xf32>
    %cst_39 = arith.constant 5.000000e-01 : f32
    %169 = vector.broadcast %cst_39 : f32 to vector<2x128xf32>
    %170 = arith.mulf %169, %168 : vector<2x128xf32>
    %cst_40 = arith.constant 5.000000e-01 : f32
    %171 = vector.broadcast %cst_40 : f32 to vector<2x128xf32>
    %172 = arith.addf %170, %171 : vector<2x128xf32>
    %173 = arith.select %8, %168, %172 : vector<2x128xi1>, vector<2x128xf32>
    %174 = vector.extract_strided_slice %173 {offsets = [0, 0], sizes = [2, 32], strides = [1, 1]} : vector<2x128xf32> to vector<2x32xf32>
    %175 = vector.extract_strided_slice %173 {offsets = [0, 32], sizes = [2, 32], strides = [1, 1]} : vector<2x128xf32> to vector<2x32xf32>
    %176 = vector.extract_strided_slice %173 {offsets = [0, 64], sizes = [2, 32], strides = [1, 1]} : vector<2x128xf32> to vector<2x32xf32>
    %177 = vector.extract_strided_slice %173 {offsets = [0, 96], sizes = [2, 32], strides = [1, 1]} : vector<2x128xf32> to vector<2x32xf32>
    %178 = arith.mulf %175, %161 : vector<2x32xf32>
    %179 = arith.mulf %174, %176 : vector<2x32xf32>
    %180 = arith.addf %178, %179 : vector<2x32xf32>
    %181 = math.tanh %180 : vector<2x32xf32>
    %182 = arith.mulf %177, %181 : vector<2x32xf32>
    %c18 = arith.constant 18 : index
    %c0_41 = arith.constant 0 : index
    %183 = vector.load %arg1[%c18, %c0_41] : memref<32x128xf32, #tpu.memory_space<vmem>>, vector<2x128xf32>
    %cst_42 = arith.constant dense<0.000000e+00> : vector<2x128xf32>
    %184 = tpu.matmul %182, %2, %cst_42 {dimension_numbers = #tpu.dot_dimension_numbers<[1], [0], [0], [1], [0, 0, 1, 1], [], []>} : vector<2x32xf32>, vector<32x128xf32>, vector<2x128xf32> -> vector<2x128xf32>
    %185 = arith.addf %183, %184 : vector<2x128xf32>
    %186 = arith.mulf %185, %11 : vector<2x128xf32>
    %187 = math.tanh %186 : vector<2x128xf32>
    %cst_43 = arith.constant 5.000000e-01 : f32
    %188 = vector.broadcast %cst_43 : f32 to vector<2x128xf32>
    %189 = arith.mulf %188, %187 : vector<2x128xf32>
    %cst_44 = arith.constant 5.000000e-01 : f32
    %190 = vector.broadcast %cst_44 : f32 to vector<2x128xf32>
    %191 = arith.addf %189, %190 : vector<2x128xf32>
    %192 = arith.select %8, %187, %191 : vector<2x128xi1>, vector<2x128xf32>
    %193 = vector.extract_strided_slice %192 {offsets = [0, 0], sizes = [2, 32], strides = [1, 1]} : vector<2x128xf32> to vector<2x32xf32>
    %194 = vector.extract_strided_slice %192 {offsets = [0, 32], sizes = [2, 32], strides = [1, 1]} : vector<2x128xf32> to vector<2x32xf32>
    %195 = vector.extract_strided_slice %192 {offsets = [0, 64], sizes = [2, 32], strides = [1, 1]} : vector<2x128xf32> to vector<2x32xf32>
    %196 = vector.extract_strided_slice %192 {offsets = [0, 96], sizes = [2, 32], strides = [1, 1]} : vector<2x128xf32> to vector<2x32xf32>
    %197 = arith.mulf %194, %180 : vector<2x32xf32>
    %198 = arith.mulf %193, %195 : vector<2x32xf32>
    %199 = arith.addf %197, %198 : vector<2x32xf32>
    %200 = math.tanh %199 : vector<2x32xf32>
    %201 = arith.mulf %196, %200 : vector<2x32xf32>
    %c20 = arith.constant 20 : index
    %c0_45 = arith.constant 0 : index
    %202 = vector.load %arg1[%c20, %c0_45] : memref<32x128xf32, #tpu.memory_space<vmem>>, vector<2x128xf32>
    %cst_46 = arith.constant dense<0.000000e+00> : vector<2x128xf32>
    %203 = tpu.matmul %201, %2, %cst_46 {dimension_numbers = #tpu.dot_dimension_numbers<[1], [0], [0], [1], [0, 0, 1, 1], [], []>} : vector<2x32xf32>, vector<32x128xf32>, vector<2x128xf32> -> vector<2x128xf32>
    %204 = arith.addf %202, %203 : vector<2x128xf32>
    %205 = arith.mulf %204, %11 : vector<2x128xf32>
    %206 = math.tanh %205 : vector<2x128xf32>
    %cst_47 = arith.constant 5.000000e-01 : f32
    %207 = vector.broadcast %cst_47 : f32 to vector<2x128xf32>
    %208 = arith.mulf %207, %206 : vector<2x128xf32>
    %cst_48 = arith.constant 5.000000e-01 : f32
    %209 = vector.broadcast %cst_48 : f32 to vector<2x128xf32>
    %210 = arith.addf %208, %209 : vector<2x128xf32>
    %211 = arith.select %8, %206, %210 : vector<2x128xi1>, vector<2x128xf32>
    %212 = vector.extract_strided_slice %211 {offsets = [0, 0], sizes = [2, 32], strides = [1, 1]} : vector<2x128xf32> to vector<2x32xf32>
    %213 = vector.extract_strided_slice %211 {offsets = [0, 32], sizes = [2, 32], strides = [1, 1]} : vector<2x128xf32> to vector<2x32xf32>
    %214 = vector.extract_strided_slice %211 {offsets = [0, 64], sizes = [2, 32], strides = [1, 1]} : vector<2x128xf32> to vector<2x32xf32>
    %215 = vector.extract_strided_slice %211 {offsets = [0, 96], sizes = [2, 32], strides = [1, 1]} : vector<2x128xf32> to vector<2x32xf32>
    %216 = arith.mulf %213, %199 : vector<2x32xf32>
    %217 = arith.mulf %212, %214 : vector<2x32xf32>
    %218 = arith.addf %216, %217 : vector<2x32xf32>
    %219 = math.tanh %218 : vector<2x32xf32>
    %220 = arith.mulf %215, %219 : vector<2x32xf32>
    %c22 = arith.constant 22 : index
    %c0_49 = arith.constant 0 : index
    %221 = vector.load %arg1[%c22, %c0_49] : memref<32x128xf32, #tpu.memory_space<vmem>>, vector<2x128xf32>
    %cst_50 = arith.constant dense<0.000000e+00> : vector<2x128xf32>
    %222 = tpu.matmul %220, %2, %cst_50 {dimension_numbers = #tpu.dot_dimension_numbers<[1], [0], [0], [1], [0, 0, 1, 1], [], []>} : vector<2x32xf32>, vector<32x128xf32>, vector<2x128xf32> -> vector<2x128xf32>
    %223 = arith.addf %221, %222 : vector<2x128xf32>
    %224 = arith.mulf %223, %11 : vector<2x128xf32>
    %225 = math.tanh %224 : vector<2x128xf32>
    %cst_51 = arith.constant 5.000000e-01 : f32
    %226 = vector.broadcast %cst_51 : f32 to vector<2x128xf32>
    %227 = arith.mulf %226, %225 : vector<2x128xf32>
    %cst_52 = arith.constant 5.000000e-01 : f32
    %228 = vector.broadcast %cst_52 : f32 to vector<2x128xf32>
    %229 = arith.addf %227, %228 : vector<2x128xf32>
    %230 = arith.select %8, %225, %229 : vector<2x128xi1>, vector<2x128xf32>
    %231 = vector.extract_strided_slice %230 {offsets = [0, 0], sizes = [2, 32], strides = [1, 1]} : vector<2x128xf32> to vector<2x32xf32>
    %232 = vector.extract_strided_slice %230 {offsets = [0, 32], sizes = [2, 32], strides = [1, 1]} : vector<2x128xf32> to vector<2x32xf32>
    %233 = vector.extract_strided_slice %230 {offsets = [0, 64], sizes = [2, 32], strides = [1, 1]} : vector<2x128xf32> to vector<2x32xf32>
    %234 = vector.extract_strided_slice %230 {offsets = [0, 96], sizes = [2, 32], strides = [1, 1]} : vector<2x128xf32> to vector<2x32xf32>
    %235 = arith.mulf %232, %218 : vector<2x32xf32>
    %236 = arith.mulf %231, %233 : vector<2x32xf32>
    %237 = arith.addf %235, %236 : vector<2x32xf32>
    %238 = math.tanh %237 : vector<2x32xf32>
    %239 = arith.mulf %234, %238 : vector<2x32xf32>
    %c24 = arith.constant 24 : index
    %c0_53 = arith.constant 0 : index
    %240 = vector.load %arg1[%c24, %c0_53] : memref<32x128xf32, #tpu.memory_space<vmem>>, vector<2x128xf32>
    %cst_54 = arith.constant dense<0.000000e+00> : vector<2x128xf32>
    %241 = tpu.matmul %239, %2, %cst_54 {dimension_numbers = #tpu.dot_dimension_numbers<[1], [0], [0], [1], [0, 0, 1, 1], [], []>} : vector<2x32xf32>, vector<32x128xf32>, vector<2x128xf32> -> vector<2x128xf32>
    %242 = arith.addf %240, %241 : vector<2x128xf32>
    %243 = arith.mulf %242, %11 : vector<2x128xf32>
    %244 = math.tanh %243 : vector<2x128xf32>
    %cst_55 = arith.constant 5.000000e-01 : f32
    %245 = vector.broadcast %cst_55 : f32 to vector<2x128xf32>
    %246 = arith.mulf %245, %244 : vector<2x128xf32>
    %cst_56 = arith.constant 5.000000e-01 : f32
    %247 = vector.broadcast %cst_56 : f32 to vector<2x128xf32>
    %248 = arith.addf %246, %247 : vector<2x128xf32>
    %249 = arith.select %8, %244, %248 : vector<2x128xi1>, vector<2x128xf32>
    %250 = vector.extract_strided_slice %249 {offsets = [0, 0], sizes = [2, 32], strides = [1, 1]} : vector<2x128xf32> to vector<2x32xf32>
    %251 = vector.extract_strided_slice %249 {offsets = [0, 32], sizes = [2, 32], strides = [1, 1]} : vector<2x128xf32> to vector<2x32xf32>
    %252 = vector.extract_strided_slice %249 {offsets = [0, 64], sizes = [2, 32], strides = [1, 1]} : vector<2x128xf32> to vector<2x32xf32>
    %253 = vector.extract_strided_slice %249 {offsets = [0, 96], sizes = [2, 32], strides = [1, 1]} : vector<2x128xf32> to vector<2x32xf32>
    %254 = arith.mulf %251, %237 : vector<2x32xf32>
    %255 = arith.mulf %250, %252 : vector<2x32xf32>
    %256 = arith.addf %254, %255 : vector<2x32xf32>
    %257 = math.tanh %256 : vector<2x32xf32>
    %258 = arith.mulf %253, %257 : vector<2x32xf32>
    %c26 = arith.constant 26 : index
    %c0_57 = arith.constant 0 : index
    %259 = vector.load %arg1[%c26, %c0_57] : memref<32x128xf32, #tpu.memory_space<vmem>>, vector<2x128xf32>
    %cst_58 = arith.constant dense<0.000000e+00> : vector<2x128xf32>
    %260 = tpu.matmul %258, %2, %cst_58 {dimension_numbers = #tpu.dot_dimension_numbers<[1], [0], [0], [1], [0, 0, 1, 1], [], []>} : vector<2x32xf32>, vector<32x128xf32>, vector<2x128xf32> -> vector<2x128xf32>
    %261 = arith.addf %259, %260 : vector<2x128xf32>
    %262 = arith.mulf %261, %11 : vector<2x128xf32>
    %263 = math.tanh %262 : vector<2x128xf32>
    %cst_59 = arith.constant 5.000000e-01 : f32
    %264 = vector.broadcast %cst_59 : f32 to vector<2x128xf32>
    %265 = arith.mulf %264, %263 : vector<2x128xf32>
    %cst_60 = arith.constant 5.000000e-01 : f32
    %266 = vector.broadcast %cst_60 : f32 to vector<2x128xf32>
    %267 = arith.addf %265, %266 : vector<2x128xf32>
    %268 = arith.select %8, %263, %267 : vector<2x128xi1>, vector<2x128xf32>
    %269 = vector.extract_strided_slice %268 {offsets = [0, 0], sizes = [2, 32], strides = [1, 1]} : vector<2x128xf32> to vector<2x32xf32>
    %270 = vector.extract_strided_slice %268 {offsets = [0, 32], sizes = [2, 32], strides = [1, 1]} : vector<2x128xf32> to vector<2x32xf32>
    %271 = vector.extract_strided_slice %268 {offsets = [0, 64], sizes = [2, 32], strides = [1, 1]} : vector<2x128xf32> to vector<2x32xf32>
    %272 = vector.extract_strided_slice %268 {offsets = [0, 96], sizes = [2, 32], strides = [1, 1]} : vector<2x128xf32> to vector<2x32xf32>
    %273 = arith.mulf %270, %256 : vector<2x32xf32>
    %274 = arith.mulf %269, %271 : vector<2x32xf32>
    %275 = arith.addf %273, %274 : vector<2x32xf32>
    %276 = math.tanh %275 : vector<2x32xf32>
    %277 = arith.mulf %272, %276 : vector<2x32xf32>
    %c28 = arith.constant 28 : index
    %c0_61 = arith.constant 0 : index
    %278 = vector.load %arg1[%c28, %c0_61] : memref<32x128xf32, #tpu.memory_space<vmem>>, vector<2x128xf32>
    %cst_62 = arith.constant dense<0.000000e+00> : vector<2x128xf32>
    %279 = tpu.matmul %277, %2, %cst_62 {dimension_numbers = #tpu.dot_dimension_numbers<[1], [0], [0], [1], [0, 0, 1, 1], [], []>} : vector<2x32xf32>, vector<32x128xf32>, vector<2x128xf32> -> vector<2x128xf32>
    %280 = arith.addf %278, %279 : vector<2x128xf32>
    %281 = arith.mulf %280, %11 : vector<2x128xf32>
    %282 = math.tanh %281 : vector<2x128xf32>
    %cst_63 = arith.constant 5.000000e-01 : f32
    %283 = vector.broadcast %cst_63 : f32 to vector<2x128xf32>
    %284 = arith.mulf %283, %282 : vector<2x128xf32>
    %cst_64 = arith.constant 5.000000e-01 : f32
    %285 = vector.broadcast %cst_64 : f32 to vector<2x128xf32>
    %286 = arith.addf %284, %285 : vector<2x128xf32>
    %287 = arith.select %8, %282, %286 : vector<2x128xi1>, vector<2x128xf32>
    %288 = vector.extract_strided_slice %287 {offsets = [0, 0], sizes = [2, 32], strides = [1, 1]} : vector<2x128xf32> to vector<2x32xf32>
    %289 = vector.extract_strided_slice %287 {offsets = [0, 32], sizes = [2, 32], strides = [1, 1]} : vector<2x128xf32> to vector<2x32xf32>
    %290 = vector.extract_strided_slice %287 {offsets = [0, 64], sizes = [2, 32], strides = [1, 1]} : vector<2x128xf32> to vector<2x32xf32>
    %291 = vector.extract_strided_slice %287 {offsets = [0, 96], sizes = [2, 32], strides = [1, 1]} : vector<2x128xf32> to vector<2x32xf32>
    %292 = arith.mulf %289, %275 : vector<2x32xf32>
    %293 = arith.mulf %288, %290 : vector<2x32xf32>
    %294 = arith.addf %292, %293 : vector<2x32xf32>
    %295 = math.tanh %294 : vector<2x32xf32>
    %296 = arith.mulf %291, %295 : vector<2x32xf32>
    %c30 = arith.constant 30 : index
    %c0_65 = arith.constant 0 : index
    %297 = vector.load %arg1[%c30, %c0_65] : memref<32x128xf32, #tpu.memory_space<vmem>>, vector<2x128xf32>
    %cst_66 = arith.constant dense<0.000000e+00> : vector<2x128xf32>
    %298 = tpu.matmul %296, %2, %cst_66 {dimension_numbers = #tpu.dot_dimension_numbers<[1], [0], [0], [1], [0, 0, 1, 1], [], []>} : vector<2x32xf32>, vector<32x128xf32>, vector<2x128xf32> -> vector<2x128xf32>
    %299 = arith.addf %297, %298 : vector<2x128xf32>
    %300 = arith.mulf %299, %11 : vector<2x128xf32>
    %301 = math.tanh %300 : vector<2x128xf32>
    %cst_67 = arith.constant 5.000000e-01 : f32
    %302 = vector.broadcast %cst_67 : f32 to vector<2x128xf32>
    %303 = arith.mulf %302, %301 : vector<2x128xf32>
    %cst_68 = arith.constant 5.000000e-01 : f32
    %304 = vector.broadcast %cst_68 : f32 to vector<2x128xf32>
    %305 = arith.addf %303, %304 : vector<2x128xf32>
    %306 = arith.select %8, %301, %305 : vector<2x128xi1>, vector<2x128xf32>
    %307 = vector.extract_strided_slice %306 {offsets = [0, 0], sizes = [2, 32], strides = [1, 1]} : vector<2x128xf32> to vector<2x32xf32>
    %308 = vector.extract_strided_slice %306 {offsets = [0, 32], sizes = [2, 32], strides = [1, 1]} : vector<2x128xf32> to vector<2x32xf32>
    %309 = vector.extract_strided_slice %306 {offsets = [0, 64], sizes = [2, 32], strides = [1, 1]} : vector<2x128xf32> to vector<2x32xf32>
    %310 = vector.extract_strided_slice %306 {offsets = [0, 96], sizes = [2, 32], strides = [1, 1]} : vector<2x128xf32> to vector<2x32xf32>
    %311 = arith.mulf %308, %294 : vector<2x32xf32>
    %312 = arith.mulf %307, %309 : vector<2x32xf32>
    %313 = arith.addf %311, %312 : vector<2x32xf32>
    %314 = math.tanh %313 : vector<2x32xf32>
    %315 = arith.mulf %310, %314 : vector<2x32xf32>
    %c0_i32 = arith.constant 0 : i32
    %316 = arith.cmpi eq, %arg0, %c0_i32 : i32
    %317 = arith.extui %316 : i1 to i32
    %c0_i32_69 = arith.constant 0 : i32
    %318 = arith.cmpi ne, %317, %c0_i32_69 : i32
    scf.if %318 {
      %c0_70 = arith.constant 0 : index
      %c0_71 = arith.constant 0 : index
      %319 = vector.load %arg3[%c0_70, %c0_71] : memref<1x32xf32, #tpu.memory_space<vmem>>, vector<1x32xf32>
      %320 = vector.broadcast %319 : vector<1x32xf32> to vector<2x32xf32>
      %321 = arith.mulf %315, %320 : vector<2x32xf32>
      %cst_72 = arith.constant dense<0.000000e+00> : vector<2xf32>
      %322 = vector.multi_reduction <add>, %321, %cst_72 [1] : vector<2x32xf32> to vector<2xf32>
      %323 = vector.shape_cast %322 : vector<2xf32> to vector<2x1xf32>
      %c0_73 = arith.constant 0 : index
      %c0_74 = arith.constant 0 : index
      %324 = vector.load %arg4[%c0_73, %c0_74] : memref<1x1xf32, #tpu.memory_space<vmem>>, vector<1x1xf32>
      %325 = vector.broadcast %324 : vector<1x1xf32> to vector<2x1xf32>
      %326 = arith.addf %323, %325 : vector<2x1xf32>
      %327 = arith.negf %326 : vector<2x1xf32>
      %328 = math.exp %327 : vector<2x1xf32>
      %cst_75 = arith.constant 1.000000e+00 : f32
      %329 = vector.broadcast %cst_75 : f32 to vector<2x1xf32>
      %330 = arith.addf %329, %328 : vector<2x1xf32>
      %331 = arith.divf %329, %330 : vector<2x1xf32>
      %c0_76 = arith.constant 0 : index
      %c0_77 = arith.constant 0 : index
      %332 = vector.load %arg5[%c0_76, %c0_77] : memref<2x1xf32, #tpu.memory_space<vmem>>, vector<2x1xf32>
      tpu.vector_store %arg5[%c0_76, %c0_77], %331 {strides = array<i32>} : memref<2x1xf32, #tpu.memory_space<vmem>>, vector<2x1xf32>,
    } else {
    }
    return
  }
  func.func @transform_0(%arg0: i32) -> (i32, i32) {
    %c0_i32 = arith.constant 0 : i32
    %c0_i32_0 = arith.constant 0 : i32
    return %arg0, %c0_i32 : i32, i32
  }
  func.func @transform_1(%arg0: i32) -> (i32, i32) {
    %c0_i32 = arith.constant 0 : i32
    %c0_i32_0 = arith.constant 0 : i32
    %c0_i32_1 = arith.constant 0 : i32
    return %c0_i32, %c0_i32_0 : i32, i32
  }
  func.func @transform_2(%arg0: i32) -> (i32, i32) {
    %c0_i32 = arith.constant 0 : i32
    %c0_i32_0 = arith.constant 0 : i32
    %c0_i32_1 = arith.constant 0 : i32
    return %c0_i32, %c0_i32_0 : i32, i32
  }
  func.func @transform_3(%arg0: i32) -> (i32, i32) {
    %c0_i32 = arith.constant 0 : i32
    %c0_i32_0 = arith.constant 0 : i32
    %c0_i32_1 = arith.constant 0 : i32
    return %c0_i32, %c0_i32_0 : i32, i32
  }
  func.func @transform_4(%arg0: i32) -> (i32, i32) {
    %c0_i32 = arith.constant 0 : i32
    %c0_i32_0 = arith.constant 0 : i32
    %c0_i32_1 = arith.constant 0 : i32
    return %c0_i32, %c0_i32_0 : i32, i32
  }
}

</mosaic_0001>

<llo_original>
// kernel: port_state_lstm_forward.1
$region0: #{port_state_lstm_forward.1}
  #allocation0 [shape = 'u32[]', space=smem, size = 0x4, offset = 0x4, fixed_abs, tag = 'smem constant byte address 0x4 - core index']
  #allocation1 [shape = 'u32[144,128]{1,0:T(1,128)}', space=vmem, size = 0x12000, scoped, tag = 'internal scratch']
  #allocation2 [shape = 'f32[2,32]{1,0:T(2,128)}', space=vmem, size = 0x400, scoped, tag = 'scratch operand']
  #allocation3 [shape = 'f32[2,32]{1,0:T(2,128)}', space=vmem, size = 0x400, scoped, tag = 'scratch operand']
  #allocation4 [shape = 'f32[1,1]{1,0:T(1,128)S(1)}', space=vmem, size = 0x200, scoped, tag = 'scoped memory for port_state_lstm_forward.1']
  %s0 = inlined_call_operand.vmem [shape: f32[32,128], index: 0, kind: input, shape index: {}]
  %s1 = inlined_call_operand.vmem [shape: f32[32,128], index: 1, kind: input, shape index: {}]
  %s2 = inlined_call_operand.vmem [shape: f32[1,32], index: 2, kind: input, shape index: {}]
  %s3 = inlined_call_operand.<no memory space> [shape: f32[1,1], index: 3, kind: input, shape index: {}]
  %s4 = inlined_call_operand.vmem [shape: f32[2,1], index: 4, kind: output, shape index: {}]
  %s5 = sld [smem:[#allocation0]]
  $region30: #{port_state_lstm_forward.1} parent=0
    _
  %s7 = ssub.s32 1, %s5
  %s8 = scalar_select 0, %s7, %s5
  %v9 = vstv %s3
  %10 = vst [vmem:[#allocation4] sm:$0x1] %v9
  // Predicated region
  $region2: #{port_state_lstm_forward.1} parent=0 // pred_check
    _
  $region3: #{port_state_lstm_forward.1} parent=0 // pred_check_branch
    %12 = sbr.rel (0) target = $region5
  $region4: #{port_state_lstm_forward.1} parent=0 // pred_region
    _
  $region5: #{port_state_lstm_forward.1} parent=0 // pred_fallthru
    _
  // Predicated region
  $region6: #{port_state_lstm_forward.1} parent=0 // pred_check
    _
  $region7: #{port_state_lstm_forward.1} parent=0 // pred_check_branch
    %14 = sbr.rel (0) target = $region9
  $region8: #{port_state_lstm_forward.1} parent=0 // pred_region
    _
  $region9: #{port_state_lstm_forward.1} parent=0 // pred_fallthru
    _
  // Predicated region
  $region10: #{port_state_lstm_forward.1} parent=0 // pred_check
    _
  $region11: #{port_state_lstm_forward.1} parent=0 // pred_check_branch
    %16 = sbr.rel (0) target = $region13
  $region12: #{port_state_lstm_forward.1} parent=0 // pred_region
    _
  $region13: #{port_state_lstm_forward.1} parent=0 // pred_fallthru
    _
  // Predicated region
  $region14: #{port_state_lstm_forward.1} parent=0 // pred_check
    _
  $region15: #{port_state_lstm_forward.1} parent=0 // pred_check_branch
    %18 = sbr.rel (0) target = $region17
  $region16: #{port_state_lstm_forward.1} parent=0 // pred_region
    _
  $region17: #{port_state_lstm_forward.1} parent=0 // pred_fallthru
    _
  %v19 = vld [vmem:[%s1] sm:$0xff]
  %v20 = vld [vmem:[%s1 + $0x8] sm:$0xff]
  %v21 = vld [vmem:[%s1 + $0x10] sm:$0xff]
  %v22 = vld [vmem:[%s1 + $0x18] sm:$0xff]
  %v23 = vlaneseq
  %v24 = vand.u32 %v23, 127
  %vm25 = vcmp.ge.s32.totalorder %v24, 64
  %vm26 = vcmp.lt.s32.totalorder %v24, 96
  %vm27 = vmand %vm25, %vm26
  %v28 = vsel %vm27, 1.0, 0.5
  %v29 = vld [vmem:[%s0] sm:$0x3]
  %vm30 = vcmask 261120
  %v32 = vsel %vm30, 0.0, 0
  %34 = vmatprep.subr.mxu0 0.0
  %35 = vmatpush1.msra.mxu0 0.0
  %36 = vmatprep.subr.mxu0 0.0
  %37 = vmatpush1.msra.mxu0 0.0
  %38 = vmatprep.subr.mxu0 0.0
  %39 = vmatpush1.msra.mxu0 0.0
  %40 = vmatprep.subr.mxu0 0.0
  %41 = vmatpush1.msra.mxu0 0.0
  %42 = vmatprep.subr.mxu0 0.0
  %43 = vmatpush1.msra.mxu0 0.0
  %44 = vmatprep.subr.mxu0 0.0
  %45 = vmatpush1.msra.mxu0 0.0
  %46 = vmatprep.subr.mxu0 0.0
  %47 = vmatpush1.msra.mxu0 0.0
  %48 = vmatprep.subr.mxu0 0.0
  %49 = vmatpush1.msra.mxu0 0.0
  %50 = vmatprep.subr.mxu0 0.0
  %51 = vmatpush1.msra.mxu0 0.0
  %52 = vmatprep.subr.mxu0 0.0
  %53 = vmatpush1.msra.mxu0 0.0
  %54 = vmatprep.subr.mxu0 0.0
  %55 = vmatpush1.msra.mxu0 0.0
  %56 = vmatprep.subr.mxu0 0.0
  %57 = vmatpush1.msra.mxu0 0.0
  %58 = vmatprep.subr.mxu0 0.0
  %59 = vmatpush1.msra.mxu0 %v22
  %60 = vmatprep.subr.mxu0 0.0
  %61 = vmatpush1.msra.mxu0 %v21
  %62 = vmatprep.subr.mxu0 0.0
  %63 = vmatpush1.msra.mxu0 %v20
  %64 = vmatprep.subr.mxu0 0.0
  %65 = vmatpush1.msra.mxu0 %v19
  %66 = vmatprep.subr.mxu0 0.0
  %67 = vmatpush2.msra.mxu0 0.0
  %68 = vmatprep.subr.mxu0 0.0
  %69 = vmatpush2.msra.mxu0 0.0
  %70 = vmatprep.subr.mxu0 0.0
  %71 = vmatpush2.msra.mxu0 0.0
  %72 = vmatprep.subr.mxu0 0.0
  %73 = vmatpush2.msra.mxu0 0.0
  %74 = vmatprep.subr.mxu0 0.0
  %75 = vmatpush2.msra.mxu0 0.0
  %76 = vmatprep.subr.mxu0 0.0
  %77 = vmatpush2.msra.mxu0 0.0
  %78 = vmatprep.subr.mxu0 0.0
  %79 = vmatpush2.msra.mxu0 0.0
  %80 = vmatprep.subr.mxu0 0.0
  %81 = vmatpush2.msra.mxu0 0.0
  %82 = vmatprep.subr.mxu0 0.0
  %83 = vmatpush2.msra.mxu0 0.0
  %84 = vmatprep.subr.mxu0 0.0
  %85 = vmatpush2.msra.mxu0 0.0
  %86 = vmatprep.subr.mxu0 0.0
  %87 = vmatpush2.msra.mxu0 0.0
  %88 = vmatprep.subr.mxu0 0.0
  %89 = vmatpush2.msra.mxu0 0.0
  %90 = vmatprep.subr.mxu0 0.0
  %91 = vmatpush2.msra.mxu0 0.0
  %92 = vmatprep.subr.mxu0 0.0
  %93 = vmatpush2.msra.mxu0 0.0
  %94 = vmatprep.subr.mxu0 0.0
  %95 = vmatpush2.msra.mxu0 0.0
  %96 = vmatprep.subr.mxu0 0.0
  %97 = vmatpush2.msra.mxu0 0.0
  %98 = vmatprep.mubr.f32.mxu0 0.0
  %99 = vmatmul.mubr.f32.gmra.mxu0 %v32
  %v100 = vpop.f32.mrf.mxu0
  %v101 = vadd.f32 0.0, %v100
  %v102 = vpop.f32.mrf.mxu0
  %103 = vdwg.mxu0
  %v104 = vadd.f32 %v29, %v101
  %v105 = vmul.f32 %v104, %v28
  %v106 = vtanh.pop %v105
  %v107 = vmul.f32 %v106, 0.5
  %v108 = vadd.f32 %v107, 0.5
  %v109 = vsel %vm27, %v106, %v108
  %v110 = vmul.f32 %v109, 0.0
  %112 = vrot.lane.b32.xlu0 %v109, 64
  %v113 = vpop.permute.xlu0 %112
  %v115 = vmul.f32 %v109, %v113
  %117 = vrot.lane.b32.xlu0 %v115, 32
  %v118 = vpop.permute.xlu0 %117
  %v120 = vadd.f32 %v110, %v118
  %v121 = vtanh.pop %v120
  %123 = vrot.lane.b32.xlu0 %v121, 64
  %v124 = vpop.permute.xlu0 %123
  %v126 = vmul.f32 %v109, %v124
  %v127 = vld [vmem:[%s0 + $0x2] sm:$0x3]
  %129 = vrot.lane.b32.xlu0 %v126, 32
  %v130 = vpop.permute.xlu0 %129
  %v131 = vsel %vm30, %v130, 0
  %133 = vmatprep.subr.mxu0 0.0
  %134 = vmatpush1.msra.mxu0 0.0
  %135 = vmatprep.subr.mxu0 0.0
  %136 = vmatpush1.msra.mxu0 0.0
  %137 = vmatprep.subr.mxu0 0.0
  %138 = vmatpush1.msra.mxu0 0.0
  %139 = vmatprep.subr.mxu0 0.0
  %140 = vmatpush1.msra.mxu0 0.0
  %141 = vmatprep.subr.mxu0 0.0
  %142 = vmatpush1.msra.mxu0 0.0
  %143 = vmatprep.subr.mxu0 0.0
  %144 = vmatpush1.msra.mxu0 0.0
  %145 = vmatprep.subr.mxu0 0.0
  %146 = vmatpush1.msra.mxu0 0.0
  %147 = vmatprep.subr.mxu0 0.0
  %148 = vmatpush1.msra.mxu0 0.0
  %149 = vmatprep.subr.mxu0 0.0
  %150 = vmatpush1.msra.mxu0 0.0
  %151 = vmatprep.subr.mxu0 0.0
  %152 = vmatpush1.msra.mxu0 0.0
  %153 = vmatprep.subr.mxu0 0.0
  %154 = vmatpush1.msra.mxu0 0.0
  %155 = vmatprep.subr.mxu0 0.0
  %156 = vmatpush1.msra.mxu0 0.0
  %157 = vmatprep.subr.mxu0 0.0
  %158 = vmatpush1.msra.mxu0 %v22
  %159 = vmatprep.subr.mxu0 0.0
  %160 = vmatpush1.msra.mxu0 %v21
  %161 = vmatprep.subr.mxu0 0.0
  %162 = vmatpush1.msra.mxu0 %v20
  %163 = vmatprep.subr.mxu0 0.0
  %164 = vmatpush1.msra.mxu0 %v19
  %165 = vmatprep.subr.mxu0 0.0
  %166 = vmatpush2.msra.mxu0 0.0
  %167 = vmatprep.subr.mxu0 0.0
  %168 = vmatpush2.msra.mxu0 0.0
  %169 = vmatprep.subr.mxu0 0.0
  %170 = vmatpush2.msra.mxu0 0.0
  %171 = vmatprep.subr.mxu0 0.0
  %172 = vmatpush2.msra.mxu0 0.0
  %173 = vmatprep.subr.mxu0 0.0
  %174 = vmatpush2.msra.mxu0 0.0
  %175 = vmatprep.subr.mxu0 0.0
  %176 = vmatpush2.msra.mxu0 0.0
  %177 = vmatprep.subr.mxu0 0.0
  %178 = vmatpush2.msra.mxu0 0.0
  %179 = vmatprep.subr.mxu0 0.0
  %180 = vmatpush2.msra.mxu0 0.0
  %181 = vmatprep.subr.mxu0 0.0
  %182 = vmatpush2.msra.mxu0 0.0
  %183 = vmatprep.subr.mxu0 0.0
  %184 = vmatpush2.msra.mxu0 0.0
  %185 = vmatprep.subr.mxu0 0.0
  %186 = vmatpush2.msra.mxu0 0.0
  %187 = vmatprep.subr.mxu0 0.0
  %188 = vmatpush2.msra.mxu0 0.0
  %189 = vmatprep.subr.mxu0 0.0
  %190 = vmatpush2.msra.mxu0 0.0
  %191 = vmatprep.subr.mxu0 0.0
  %192 = vmatpush2.msra.mxu0 0.0
  %193 = vmatprep.subr.mxu0 0.0
  %194 = vmatpush2.msra.mxu0 0.0
  %195 = vmatprep.subr.mxu0 0.0
  %196 = vmatpush2.msra.mxu0 0.0
  %197 = vmatprep.mubr.f32.mxu0 0.0
  %198 = vmatmul.mubr.f32.gmra.mxu0 %v131
  %v199 = vpop.f32.mrf.mxu0
  %v200 = vadd.f32 0.0, %v199
  %v201 = vpop.f32.mrf.mxu0
  %202 = vdwg.mxu0
  %v203 = vadd.f32 %v127, %v200
  %v204 = vmul.f32 %v203, %v28
  %v205 = vtanh.pop %v204
  %v206 = vmul.f32 %v205, 0.5
  %v207 = vadd.f32 %v206, 0.5
  %v208 = vsel %vm27, %v205, %v207
  %v209 = vmul.f32 %v208, %v120
  %211 = vrot.lane.b32.xlu0 %v208, 64
  %v212 = vpop.permute.xlu0 %211
  %v214 = vmul.f32 %v208, %v212
  %216 = vrot.lane.b32.xlu0 %v214, 32
  %v217 = vpop.permute.xlu0 %216
  %v219 = vadd.f32 %v209, %v217
  %v220 = vtanh.pop %v219
  %222 = vrot.lane.b32.xlu0 %v220, 64
  %v223 = vpop.permute.xlu0 %222
  %v225 = vmul.f32 %v208, %v223
  %v226 = vld [vmem:[%s0 + $0x4] sm:$0x3]
  %228 = vrot.lane.b32.xlu0 %v225, 32
  %v229 = vpop.permute.xlu0 %228
  %v230 = vsel %vm30, %v229, 0
  %232 = vmatprep.subr.mxu0 0.0
  %233 = vmatpush1.msra.mxu0 0.0
  %234 = vmatprep.subr.mxu0 0.0
  %235 = vmatpush1.msra.mxu0 0.0
  %236 = vmatprep.subr.mxu0 0.0
  %237 = vmatpush1.msra.mxu0 0.0
  %238 = vmatprep.subr.mxu0 0.0
  %239 = vmatpush1.msra.mxu0 0.0
  %240 = vmatprep.subr.mxu0 0.0
  %241 = vmatpush1.msra.mxu0 0.0
  %242 = vmatprep.subr.mxu0 0.0
  %243 = vmatpush1.msra.mxu0 0.0
  %244 = vmatprep.subr.mxu0 0.0
  %245 = vmatpush1.msra.mxu0 0.0
  %246 = vmatprep.subr.mxu0 0.0
  %247 = vmatpush1.msra.mxu0 0.0
  %248 = vmatprep.subr.mxu0 0.0
  %249 = vmatpush1.msra.mxu0 0.0
  %250 = vmatprep.subr.mxu0 0.0
  %251 = vmatpush1.msra.mxu0 0.0
  %252 = vmatprep.subr.mxu0 0.0
  %253 = vmatpush1.msra.mxu0 0.0
  %254 = vmatprep.subr.mxu0 0.0
  %255 = vmatpush1.msra.mxu0 0.0
  %256 = vmatprep.subr.mxu0 0.0
  %257 = vmatpush1.msra.mxu0 %v22
  %258 = vmatprep.subr.mxu0 0.0
  %259 = vmatpush1.msra.mxu0 %v21
  %260 = vmatprep.subr.mxu0 0.0
  %261 = vmatpush1.msra.mxu0 %v20
  %262 = vmatprep.subr.mxu0 0.0
  %263 = vmatpush1.msra.mxu0 %v19
  %264 = vmatprep.subr.mxu0 0.0
  %265 = vmatpush2.msra.mxu0 0.0
  %266 = vmatprep.subr.mxu0 0.0
  %267 = vmatpush2.msra.mxu0 0.0
  %268 = vmatprep.subr.mxu0 0.0
  %269 = vmatpush2.msra.mxu0 0.0
  %270 = vmatprep.subr.mxu0 0.0
  %271 = vmatpush2.msra.mxu0 0.0
  %272 = vmatprep.subr.mxu0 0.0
  %273 = vmatpush2.msra.mxu0 0.0
  %274 = vmatprep.subr.mxu0 0.0
  %275 = vmatpush2.msra.mxu0 0.0
  %276 = vmatprep.subr.mxu0 0.0
  %277 = vmatpush2.msra.mxu0 0.0
  %278 = vmatprep.subr.mxu0 0.0
  %279 = vmatpush2.msra.mxu0 0.0
  %280 = vmatprep.subr.mxu0 0.0
  %281 = vmatpush2.msra.mxu0 0.0
  %282 = vmatprep.subr.mxu0 0.0
  %283 = vmatpush2.msra.mxu0 0.0
  %284 = vmatprep.subr.mxu0 0.0
  %285 = vmatpush2.msra.mxu0 0.0
  %286 = vmatprep.subr.mxu0 0.0
  %287 = vmatpush2.msra.mxu0 0.0
  %288 = vmatprep.subr.mxu0 0.0
  %289 = vmatpush2.msra.mxu0 0.0
  %290 = vmatprep.subr.mxu0 0.0
  %291 = vmatpush2.msra.mxu0 0.0
  %292 = vmatprep.subr.mxu0 0.0
  %293 = vmatpush2.msra.mxu0 0.0
  %294 = vmatprep.subr.mxu0 0.0
  %295 = vmatpush2.msra.mxu0 0.0
  %296 = vmatprep.mubr.f32.mxu0 0.0
  %297 = vmatmul.mubr.f32.gmra.mxu0 %v230
  %v298 = vpop.f32.mrf.mxu0
  %v299 = vadd.f32 0.0, %v298
  %v300 = vpop.f32.mrf.mxu0
  %301 = vdwg.mxu0
  %v302 = vadd.f32 %v226, %v299
  %v303 = vmul.f32 %v302, %v28
  %v304 = vtanh.pop %v303
  %v305 = vmul.f32 %v304, 0.5
  %v306 = vadd.f32 %v305, 0.5
  %v307 = vsel %vm27, %v304, %v306
  %v308 = vmul.f32 %v307, %v219
  %310 = vrot.lane.b32.xlu0 %v307, 64
  %v311 = vpop.permute.xlu0 %310
  %v313 = vmul.f32 %v307, %v311
  %315 = vrot.lane.b32.xlu0 %v313, 32
  %v316 = vpop.permute.xlu0 %315
  %v318 = vadd.f32 %v308, %v316
  %v319 = vtanh.pop %v318
  %321 = vrot.lane.b32.xlu0 %v319, 64
  %v322 = vpop.permute.xlu0 %321
  %v324 = vmul.f32 %v307, %v322
  %v325 = vld [vmem:[%s0 + $0x6] sm:$0x3]
  %327 = vrot.lane.b32.xlu0 %v324, 32
  %v328 = vpop.permute.xlu0 %327
  %v329 = vsel %vm30, %v328, 0
  %331 = vmatprep.subr.mxu0 0.0
  %332 = vmatpush1.msra.mxu0 0.0
  %333 = vmatprep.subr.mxu0 0.0
  %334 = vmatpush1.msra.mxu0 0.0
  %335 = vmatprep.subr.mxu0 0.0
  %336 = vmatpush1.msra.mxu0 0.0
  %337 = vmatprep.subr.mxu0 0.0
  %338 = vmatpush1.msra.mxu0 0.0
  %339 = vmatprep.subr.mxu0 0.0
  %340 = vmatpush1.msra.mxu0 0.0
  %341 = vmatprep.subr.mxu0 0.0
  %342 = vmatpush1.msra.mxu0 0.0
  %343 = vmatprep.subr.mxu0 0.0
  %344 = vmatpush1.msra.mxu0 0.0
  %345 = vmatprep.subr.mxu0 0.0
  %346 = vmatpush1.msra.mxu0 0.0
  %347 = vmatprep.subr.mxu0 0.0
  %348 = vmatpush1.msra.mxu0 0.0
  %349 = vmatprep.subr.mxu0 0.0
  %350 = vmatpush1.msra.mxu0 0.0
  %351 = vmatprep.subr.mxu0 0.0
  %352 = vmatpush1.msra.mxu0 0.0
  %353 = vmatprep.subr.mxu0 0.0
  %354 = vmatpush1.msra.mxu0 0.0
  %355 = vmatprep.subr.mxu0 0.0
  %356 = vmatpush1.msra.mxu0 %v22
  %357 = vmatprep.subr.mxu0 0.0
  %358 = vmatpush1.msra.mxu0 %v21
  %359 = vmatprep.subr.mxu0 0.0
  %360 = vmatpush1.msra.mxu0 %v20
  %361 = vmatprep.subr.mxu0 0.0
  %362 = vmatpush1.msra.mxu0 %v19
  %363 = vmatprep.subr.mxu0 0.0
  %364 = vmatpush2.msra.mxu0 0.0
  %365 = vmatprep.subr.mxu0 0.0
  %366 = vmatpush2.msra.mxu0 0.0
  %367 = vmatprep.subr.mxu0 0.0
  %368 = vmatpush2.msra.mxu0 0.0
  %369 = vmatprep.subr.mxu0 0.0
  %370 = vmatpush2.msra.mxu0 0.0
  %371 = vmatprep.subr.mxu0 0.0
  %372 = vmatpush2.msra.mxu0 0.0
  %373 = vmatprep.subr.mxu0 0.0
  %374 = vmatpush2.msra.mxu0 0.0
  %375 = vmatprep.subr.mxu0 0.0
  %376 = vmatpush2.msra.mxu0 0.0
  %377 = vmatprep.subr.mxu0 0.0
  %378 = vmatpush2.msra.mxu0 0.0
  %379 = vmatprep.subr.mxu0 0.0
  %380 = vmatpush2.msra.mxu0 0.0
  %381 = vmatprep.subr.mxu0 0.0
  %382 = vmatpush2.msra.mxu0 0.0
  %383 = vmatprep.subr.mxu0 0.0
  %384 = vmatpush2.msra.mxu0 0.0
  %385 = vmatprep.subr.mxu0 0.0
  %386 = vmatpush2.msra.mxu0 0.0
  %387 = vmatprep.subr.mxu0 0.0
  %388 = vmatpush2.msra.mxu0 0.0
  %389 = vmatprep.subr.mxu0 0.0
  %390 = vmatpush2.msra.mxu0 0.0
  %391 = vmatprep.subr.mxu0 0.0
  %392 = vmatpush2.msra.mxu0 0.0
  %393 = vmatprep.subr.mxu0 0.0
  %394 = vmatpush2.msra.mxu0 0.0
  %395 = vmatprep.mubr.f32.mxu0 0.0
  %396 = vmatmul.mubr.f32.gmra.mxu0 %v329
  %v397 = vpop.f32.mrf.mxu0
  %v398 = vadd.f32 0.0, %v397
  %v399 = vpop.f32.mrf.mxu0
  %400 = vdwg.mxu0
  %v401 = vadd.f32 %v325, %v398
  %v402 = vmul.f32 %v401, %v28
  %v403 = vtanh.pop %v402
  %v404 = vmul.f32 %v403, 0.5
  %v405 = vadd.f32 %v404, 0.5
  %v406 = vsel %vm27, %v403, %v405
  %v407 = vmul.f32 %v406, %v318
  %409 = vrot.lane.b32.xlu0 %v406, 64
  %v410 = vpop.permute.xlu0 %409
  %v412 = vmul.f32 %v406, %v410
  %414 = vrot.lane.b32.xlu0 %v412, 32
  %v415 = vpop.permute.xlu0 %414
  %v417 = vadd.f32 %v407, %v415
  %v418 = vtanh.pop %v417
  %420 = vrot.lane.b32.xlu0 %v418, 64
  %v421 = vpop.permute.xlu0 %420
  %v423 = vmul.f32 %v406, %v421
  %v424 = vld [vmem:[%s0 + $0x8] sm:$0x3]
  %426 = vrot.lane.b32.xlu0 %v423, 32
  %v427 = vpop.permute.xlu0 %426
  %v428 = vsel %vm30, %v427, 0
  %430 = vmatprep.subr.mxu0 0.0
  %431 = vmatpush1.msra.mxu0 0.0
  %432 = vmatprep.subr.mxu0 0.0
  %433 = vmatpush1.msra.mxu0 0.0
  %434 = vmatprep.subr.mxu0 0.0
  %435 = vmatpush1.msra.mxu0 0.0
  %436 = vmatprep.subr.mxu0 0.0
  %437 = vmatpush1.msra.mxu0 0.0
  %438 = vmatprep.subr.mxu0 0.0
  %439 = vmatpush1.msra.mxu0 0.0
  %440 = vmatprep.subr.mxu0 0.0
  %441 = vmatpush1.msra.mxu0 0.0
  %442 = vmatprep.subr.mxu0 0.0
  %443 = vmatpush1.msra.mxu0 0.0
  %444 = vmatprep.subr.mxu0 0.0
  %445 = vmatpush1.msra.mxu0 0.0
  %446 = vmatprep.subr.mxu0 0.0
  %447 = vmatpush1.msra.mxu0 0.0
  %448 = vmatprep.subr.mxu0 0.0
  %449 = vmatpush1.msra.mxu0 0.0
  %450 = vmatprep.subr.mxu0 0.0
  %451 = vmatpush1.msra.mxu0 0.0
  %452 = vmatprep.subr.mxu0 0.0
  %453 = vmatpush1.msra.mxu0 0.0
  %454 = vmatprep.subr.mxu0 0.0
  %455 = vmatpush1.msra.mxu0 %v22
  %456 = vmatprep.subr.mxu0 0.0
  %457 = vmatpush1.msra.mxu0 %v21
  %458 = vmatprep.subr.mxu0 0.0
  %459 = vmatpush1.msra.mxu0 %v20
  %460 = vmatprep.subr.mxu0 0.0
  %461 = vmatpush1.msra.mxu0 %v19
  %462 = vmatprep.subr.mxu0 0.0
  %463 = vmatpush2.msra.mxu0 0.0
  %464 = vmatprep.subr.mxu0 0.0
  %465 = vmatpush2.msra.mxu0 0.0
  %466 = vmatprep.subr.mxu0 0.0
  %467 = vmatpush2.msra.mxu0 0.0
  %468 = vmatprep.subr.mxu0 0.0
  %469 = vmatpush2.msra.mxu0 0.0
  %470 = vmatprep.subr.mxu0 0.0
  %471 = vmatpush2.msra.mxu0 0.0
  %472 = vmatprep.subr.mxu0 0.0
  %473 = vmatpush2.msra.mxu0 0.0
  %474 = vmatprep.subr.mxu0 0.0
  %475 = vmatpush2.msra.mxu0 0.0
  %476 = vmatprep.subr.mxu0 0.0
  %477 = vmatpush2.msra.mxu0 0.0
  %478 = vmatprep.subr.mxu0 0.0
  %479 = vmatpush2.msra.mxu0 0.0
  %480 = vmatprep.subr.mxu0 0.0
  %481 = vmatpush2.msra.mxu0 0.0
  %482 = vmatprep.subr.mxu0 0.0
  %483 = vmatpush2.msra.mxu0 0.0
  %484 = vmatprep.subr.mxu0 0.0
  %485 = vmatpush2.msra.mxu0 0.0
  %486 = vmatprep.subr.mxu0 0.0
  %487 = vmatpush2.msra.mxu0 0.0
  %488 = vmatprep.subr.mxu0 0.0
  %489 = vmatpush2.msra.mxu0 0.0
  %490 = vmatprep.subr.mxu0 0.0
  %491 = vmatpush2.msra.mxu0 0.0
  %492 = vmatprep.subr.mxu0 0.0
  %493 = vmatpush2.msra.mxu0 0.0
  %494 = vmatprep.mubr.f32.mxu0 0.0
  %495 = vmatmul.mubr.f32.gmra.mxu0 %v428
  %v496 = vpop.f32.mrf.mxu0
  %v497 = vadd.f32 0.0, %v496
  %v498 = vpop.f32.mrf.mxu0
  %499 = vdwg.mxu0
  %v500 = vadd.f32 %v424, %v497
  %v501 = vmul.f32 %v500, %v28
  %v502 = vtanh.pop %v501
  %v503 = vmul.f32 %v502, 0.5
  %v504 = vadd.f32 %v503, 0.5
  %v505 = vsel %vm27, %v502, %v504
  %v506 = vmul.f32 %v505, %v417
  %508 = vrot.lane.b32.xlu0 %v505, 64
  %v509 = vpop.permute.xlu0 %508
  %v511 = vmul.f32 %v505, %v509
  %513 = vrot.lane.b32.xlu0 %v511, 32
  %v514 = vpop.permute.xlu0 %513
  %v516 = vadd.f32 %v506, %v514
  %v517 = vtanh.pop %v516
  %519 = vrot.lane.b32.xlu0 %v517, 64
  %v520 = vpop.permute.xlu0 %519
  %v522 = vmul.f32 %v505, %v520
  %v523 = vld [vmem:[%s0 + $0xa] sm:$0x3]
  %525 = vrot.lane.b32.xlu0 %v522, 32
  %v526 = vpop.permute.xlu0 %525
  %v527 = vsel %vm30, %v526, 0
  %529 = vmatprep.subr.mxu0 0.0
  %530 = vmatpush1.msra.mxu0 0.0
  %531 = vmatprep.subr.mxu0 0.0
  %532 = vmatpush1.msra.mxu0 0.0
  %533 = vmatprep.subr.mxu0 0.0
  %534 = vmatpush1.msra.mxu0 0.0
  %535 = vmatprep.subr.mxu0 0.0
  %536 = vmatpush1.msra.mxu0 0.0
  %537 = vmatprep.subr.mxu0 0.0
  %538 = vmatpush1.msra.mxu0 0.0
  %539 = vmatprep.subr.mxu0 0.0
  %540 = vmatpush1.msra.mxu0 0.0
  %541 = vmatprep.subr.mxu0 0.0
  %542 = vmatpush1.msra.mxu0 0.0
  %543 = vmatprep.subr.mxu0 0.0
  %544 = vmatpush1.msra.mxu0 0.0
  %545 = vmatprep.subr.mxu0 0.0
  %546 = vmatpush1.msra.mxu0 0.0
  %547 = vmatprep.subr.mxu0 0.0
  %548 = vmatpush1.msra.mxu0 0.0
  %549 = vmatprep.subr.mxu0 0.0
  %550 = vmatpush1.msra.mxu0 0.0
  %551 = vmatprep.subr.mxu0 0.0
  %552 = vmatpush1.msra.mxu0 0.0
  %553 = vmatprep.subr.mxu0 0.0
  %554 = vmatpush1.msra.mxu0 %v22
  %555 = vmatprep.subr.mxu0 0.0
  %556 = vmatpush1.msra.mxu0 %v21
  %557 = vmatprep.subr.mxu0 0.0
  %558 = vmatpush1.msra.mxu0 %v20
  %559 = vmatprep.subr.mxu0 0.0
  %560 = vmatpush1.msra.mxu0 %v19
  %561 = vmatprep.subr.mxu0 0.0
  %562 = vmatpush2.msra.mxu0 0.0
  %563 = vmatprep.subr.mxu0 0.0
  %564 = vmatpush2.msra.mxu0 0.0
  %565 = vmatprep.subr.mxu0 0.0
  %566 = vmatpush2.msra.mxu0 0.0
  %567 = vmatprep.subr.mxu0 0.0
  %568 = vmatpush2.msra.mxu0 0.0
  %569 = vmatprep.subr.mxu0 0.0
  %570 = vmatpush2.msra.mxu0 0.0
  %571 = vmatprep.subr.mxu0 0.0
  %572 = vmatpush2.msra.mxu0 0.0
  %573 = vmatprep.subr.mxu0 0.0
  %574 = vmatpush2.msra.mxu0 0.0
  %575 = vmatprep.subr.mxu0 0.0
  %576 = vmatpush2.msra.mxu0 0.0
  %577 = vmatprep.subr.mxu0 0.0
  %578 = vmatpush2.msra.mxu0 0.0
  %579 = vmatprep.subr.mxu0 0.0
  %580 = vmatpush2.msra.mxu0 0.0
  %581 = vmatprep.subr.mxu0 0.0
  %582 = vmatpush2.msra.mxu0 0.0
  %583 = vmatprep.subr.mxu0 0.0
  %584 = vmatpush2.msra.mxu0 0.0
  %585 = vmatprep.subr.mxu0 0.0
  %586 = vmatpush2.msra.mxu0 0.0
  %587 = vmatprep.subr.mxu0 0.0
  %588 = vmatpush2.msra.mxu0 0.0
  %589 = vmatprep.subr.mxu0 0.0
  %590 = vmatpush2.msra.mxu0 0.0
  %591 = vmatprep.subr.mxu0 0.0
  %592 = vmatpush2.msra.mxu0 0.0
  %593 = vmatprep.mubr.f32.mxu0 0.0
  %594 = vmatmul.mubr.f32.gmra.mxu0 %v527
  %v595 = vpop.f32.mrf.mxu0
  %v596 = vadd.f32 0.0, %v595
  %v597 = vpop.f32.mrf.mxu0
  %598 = vdwg.mxu0
  %v599 = vadd.f32 %v523, %v596
  %v600 = vmul.f32 %v599, %v28
  %v601 = vtanh.pop %v600
  %v602 = vmul.f32 %v601, 0.5
  %v603 = vadd.f32 %v602, 0.5
  %v604 = vsel %vm27, %v601, %v603
  %v605 = vmul.f32 %v604, %v516
  %607 = vrot.lane.b32.xlu0 %v604, 64
  %v608 = vpop.permute.xlu0 %607
  %v610 = vmul.f32 %v604, %v608
  %612 = vrot.lane.b32.xlu0 %v610, 32
  %v613 = vpop.permute.xlu0 %612
  %v615 = vadd.f32 %v605, %v613
  %v616 = vtanh.pop %v615
  %618 = vrot.lane.b32.xlu0 %v616, 64
  %v619 = vpop.permute.xlu0 %618
  %v621 = vmul.f32 %v604, %v619
  %v622 = vld [vmem:[%s0 + $0xc] sm:$0x3]
  %624 = vrot.lane.b32.xlu0 %v621, 32
  %v625 = vpop.permute.xlu0 %624
  %v626 = vsel %vm30, %v625, 0
  %628 = vmatprep.subr.mxu0 0.0
  %629 = vmatpush1.msra.mxu0 0.0
  %630 = vmatprep.subr.mxu0 0.0
  %631 = vmatpush1.msra.mxu0 0.0
  %632 = vmatprep.subr.mxu0 0.0
  %633 = vmatpush1.msra.mxu0 0.0
  %634 = vmatprep.subr.mxu0 0.0
  %635 = vmatpush1.msra.mxu0 0.0
  %636 = vmatprep.subr.mxu0 0.0
  %637 = vmatpush1.msra.mxu0 0.0
  %638 = vmatprep.subr.mxu0 0.0
  %639 = vmatpush1.msra.mxu0 0.0
  %640 = vmatprep.subr.mxu0 0.0
  %641 = vmatpush1.msra.mxu0 0.0
  %642 = vmatprep.subr.mxu0 0.0
  %643 = vmatpush1.msra.mxu0 0.0
  %644 = vmatprep.subr.mxu0 0.0
  %645 = vmatpush1.msra.mxu0 0.0
  %646 = vmatprep.subr.mxu0 0.0
  %647 = vmatpush1.msra.mxu0 0.0
  %648 = vmatprep.subr.mxu0 0.0
  %649 = vmatpush1.msra.mxu0 0.0
  %650 = vmatprep.subr.mxu0 0.0
  %651 = vmatpush1.msra.mxu0 0.0
  %652 = vmatprep.subr.mxu0 0.0
  %653 = vmatpush1.msra.mxu0 %v22
  %654 = vmatprep.subr.mxu0 0.0
  %655 = vmatpush1.msra.mxu0 %v21
  %656 = vmatprep.subr.mxu0 0.0
  %657 = vmatpush1.msra.mxu0 %v20
  %658 = vmatprep.subr.mxu0 0.0
  %659 = vmatpush1.msra.mxu0 %v19
  %660 = vmatprep.subr.mxu0 0.0
  %661 = vmatpush2.msra.mxu0 0.0
  %662 = vmatprep.subr.mxu0 0.0
  %663 = vmatpush2.msra.mxu0 0.0
  %664 = vmatprep.subr.mxu0 0.0
  %665 = vmatpush2.msra.mxu0 0.0
  %666 = vmatprep.subr.mxu0 0.0
  %667 = vmatpush2.msra.mxu0 0.0
  %668 = vmatprep.subr.mxu0 0.0
  %669 = vmatpush2.msra.mxu0 0.0
  %670 = vmatprep.subr.mxu0 0.0
  %671 = vmatpush2.msra.mxu0 0.0
  %672 = vmatprep.subr.mxu0 0.0
  %673 = vmatpush2.msra.mxu0 0.0
  %674 = vmatprep.subr.mxu0 0.0
  %675 = vmatpush2.msra.mxu0 0.0
  %676 = vmatprep.subr.mxu0 0.0
  %677 = vmatpush2.msra.mxu0 0.0
  %678 = vmatprep.subr.mxu0 0.0
  %679 = vmatpush2.msra.mxu0 0.0
  %680 = vmatprep.subr.mxu0 0.0
  %681 = vmatpush2.msra.mxu0 0.0
  %682 = vmatprep.subr.mxu0 0.0
  %683 = vmatpush2.msra.mxu0 0.0
  %684 = vmatprep.subr.mxu0 0.0
  %685 = vmatpush2.msra.mxu0 0.0
  %686 = vmatprep.subr.mxu0 0.0
  %687 = vmatpush2.msra.mxu0 0.0
  %688 = vmatprep.subr.mxu0 0.0
  %689 = vmatpush2.msra.mxu0 0.0
  %690 = vmatprep.subr.mxu0 0.0
  %691 = vmatpush2.msra.mxu0 0.0
  %692 = vmatprep.mubr.f32.mxu0 0.0
  %693 = vmatmul.mubr.f32.gmra.mxu0 %v626
  %v694 = vpop.f32.mrf.mxu0
  %v695 = vadd.f32 0.0, %v694
  %v696 = vpop.f32.mrf.mxu0
  %697 = vdwg.mxu0
  %v698 = vadd.f32 %v622, %v695
  %v699 = vmul.f32 %v698, %v28
  %v700 = vtanh.pop %v699
  %v701 = vmul.f32 %v700, 0.5
  %v702 = vadd.f32 %v701, 0.5
  %v703 = vsel %vm27, %v700, %v702
  %v704 = vmul.f32 %v703, %v615
  %706 = vrot.lane.b32.xlu0 %v703, 64
  %v707 = vpop.permute.xlu0 %706
  %v709 = vmul.f32 %v703, %v707
  %711 = vrot.lane.b32.xlu0 %v709, 32
  %v712 = vpop.permute.xlu0 %711
  %v714 = vadd.f32 %v704, %v712
  %v715 = vtanh.pop %v714
  %717 = vrot.lane.b32.xlu0 %v715, 64
  %v718 = vpop.permute.xlu0 %717
  %v720 = vmul.f32 %v703, %v718
  %v721 = vld [vmem:[%s0 + $0xe] sm:$0x3]
  %723 = vrot.lane.b32.xlu0 %v720, 32
  %v724 = vpop.permute.xlu0 %723
  %v725 = vsel %vm30, %v724, 0
  %727 = vmatprep.subr.mxu0 0.0
  %728 = vmatpush1.msra.mxu0 0.0
  %729 = vmatprep.subr.mxu0 0.0
  %730 = vmatpush1.msra.mxu0 0.0
  %731 = vmatprep.subr.mxu0 0.0
  %732 = vmatpush1.msra.mxu0 0.0
  %733 = vmatprep.subr.mxu0 0.0
  %734 = vmatpush1.msra.mxu0 0.0
  %735 = vmatprep.subr.mxu0 0.0
  %736 = vmatpush1.msra.mxu0 0.0
  %737 = vmatprep.subr.mxu0 0.0
  %738 = vmatpush1.msra.mxu0 0.0
  %739 = vmatprep.subr.mxu0 0.0
  %740 = vmatpush1.msra.mxu0 0.0
  %741 = vmatprep.subr.mxu0 0.0
  %742 = vmatpush1.msra.mxu0 0.0
  %743 = vmatprep.subr.mxu0 0.0
  %744 = vmatpush1.msra.mxu0 0.0
  %745 = vmatprep.subr.mxu0 0.0
  %746 = vmatpush1.msra.mxu0 0.0
  %747 = vmatprep.subr.mxu0 0.0
  %748 = vmatpush1.msra.mxu0 0.0
  %749 = vmatprep.subr.mxu0 0.0
  %750 = vmatpush1.msra.mxu0 0.0
  %751 = vmatprep.subr.mxu0 0.0
  %752 = vmatpush1.msra.mxu0 %v22
  %753 = vmatprep.subr.mxu0 0.0
  %754 = vmatpush1.msra.mxu0 %v21
  %755 = vmatprep.subr.mxu0 0.0
  %756 = vmatpush1.msra.mxu0 %v20
  %757 = vmatprep.subr.mxu0 0.0
  %758 = vmatpush1.msra.mxu0 %v19
  %759 = vmatprep.subr.mxu0 0.0
  %760 = vmatpush2.msra.mxu0 0.0
  %761 = vmatprep.subr.mxu0 0.0
  %762 = vmatpush2.msra.mxu0 0.0
  %763 = vmatprep.subr.mxu0 0.0
  %764 = vmatpush2.msra.mxu0 0.0
  %765 = vmatprep.subr.mxu0 0.0
  %766 = vmatpush2.msra.mxu0 0.0
  %767 = vmatprep.subr.mxu0 0.0
  %768 = vmatpush2.msra.mxu0 0.0
  %769 = vmatprep.subr.mxu0 0.0
  %770 = vmatpush2.msra.mxu0 0.0
  %771 = vmatprep.subr.mxu0 0.0
  %772 = vmatpush2.msra.mxu0 0.0
  %773 = vmatprep.subr.mxu0 0.0
  %774 = vmatpush2.msra.mxu0 0.0
  %775 = vmatprep.subr.mxu0 0.0
  %776 = vmatpush2.msra.mxu0 0.0
  %777 = vmatprep.subr.mxu0 0.0
  %778 = vmatpush2.msra.mxu0 0.0
  %779 = vmatprep.subr.mxu0 0.0
  %780 = vmatpush2.msra.mxu0 0.0
  %781 = vmatprep.subr.mxu0 0.0
  %782 = vmatpush2.msra.mxu0 0.0
  %783 = vmatprep.subr.mxu0 0.0
  %784 = vmatpush2.msra.mxu0 0.0
  %785 = vmatprep.subr.mxu0 0.0
  %786 = vmatpush2.msra.mxu0 0.0
  %787 = vmatprep.subr.mxu0 0.0
  %788 = vmatpush2.msra.mxu0 0.0
  %789 = vmatprep.subr.mxu0 0.0
  %790 = vmatpush2.msra.mxu0 0.0
  %791 = vmatprep.mubr.f32.mxu0 0.0
  %792 = vmatmul.mubr.f32.gmra.mxu0 %v725
  %v793 = vpop.f32.mrf.mxu0
  %v794 = vadd.f32 0.0, %v793
  %v795 = vpop.f32.mrf.mxu0
  %796 = vdwg.mxu0
  %v797 = vadd.f32 %v721, %v794
  %v798 = vmul.f32 %v797, %v28
  %v799 = vtanh.pop %v798
  %v800 = vmul.f32 %v799, 0.5
  %v801 = vadd.f32 %v800, 0.5
  %v802 = vsel %vm27, %v799, %v801
  %v803 = vmul.f32 %v802, %v714
  %805 = vrot.lane.b32.xlu0 %v802, 64
  %v806 = vpop.permute.xlu0 %805
  %v808 = vmul.f32 %v802, %v806
  %810 = vrot.lane.b32.xlu0 %v808, 32
  %v811 = vpop.permute.xlu0 %810
  %v813 = vadd.f32 %v803, %v811
  %v814 = vtanh.pop %v813
  %816 = vrot.lane.b32.xlu0 %v814, 64
  %v817 = vpop.permute.xlu0 %816
  %v819 = vmul.f32 %v802, %v817
  %v820 = vld [vmem:[%s0 + $0x10] sm:$0x3]
  %822 = vrot.lane.b32.xlu0 %v819, 32
  %v823 = vpop.permute.xlu0 %822
  %v824 = vsel %vm30, %v823, 0
  %826 = vmatprep.subr.mxu0 0.0
  %827 = vmatpush1.msra.mxu0 0.0
  %828 = vmatprep.subr.mxu0 0.0
  %829 = vmatpush1.msra.mxu0 0.0
  %830 = vmatprep.subr.mxu0 0.0
  %831 = vmatpush1.msra.mxu0 0.0
  %832 = vmatprep.subr.mxu0 0.0
  %833 = vmatpush1.msra.mxu0 0.0
  %834 = vmatprep.subr.mxu0 0.0
  %835 = vmatpush1.msra.mxu0 0.0
  %836 = vmatprep.subr.mxu0 0.0
  %837 = vmatpush1.msra.mxu0 0.0
  %838 = vmatprep.subr.mxu0 0.0
  %839 = vmatpush1.msra.mxu0 0.0
  %840 = vmatprep.subr.mxu0 0.0
  %841 = vmatpush1.msra.mxu0 0.0
  %842 = vmatprep.subr.mxu0 0.0
  %843 = vmatpush1.msra.mxu0 0.0
  %844 = vmatprep.subr.mxu0 0.0
  %845 = vmatpush1.msra.mxu0 0.0
  %846 = vmatprep.subr.mxu0 0.0
  %847 = vmatpush1.msra.mxu0 0.0
  %848 = vmatprep.subr.mxu0 0.0
  %849 = vmatpush1.msra.mxu0 0.0
  %850 = vmatprep.subr.mxu0 0.0
  %851 = vmatpush1.msra.mxu0 %v22
  %852 = vmatprep.subr.mxu0 0.0
  %853 = vmatpush1.msra.mxu0 %v21
  %854 = vmatprep.subr.mxu0 0.0
  %855 = vmatpush1.msra.mxu0 %v20
  %856 = vmatprep.subr.mxu0 0.0
  %857 = vmatpush1.msra.mxu0 %v19
  %858 = vmatprep.subr.mxu0 0.0
  %859 = vmatpush2.msra.mxu0 0.0
  %860 = vmatprep.subr.mxu0 0.0
  %861 = vmatpush2.msra.mxu0 0.0
  %862 = vmatprep.subr.mxu0 0.0
  %863 = vmatpush2.msra.mxu0 0.0
  %864 = vmatprep.subr.mxu0 0.0
  %865 = vmatpush2.msra.mxu0 0.0
  %866 = vmatprep.subr.mxu0 0.0
  %867 = vmatpush2.msra.mxu0 0.0
  %868 = vmatprep.subr.mxu0 0.0
  %869 = vmatpush2.msra.mxu0 0.0
  %870 = vmatprep.subr.mxu0 0.0
  %871 = vmatpush2.msra.mxu0 0.0
  %872 = vmatprep.subr.mxu0 0.0
  %873 = vmatpush2.msra.mxu0 0.0
  %874 = vmatprep.subr.mxu0 0.0
  %875 = vmatpush2.msra.mxu0 0.0
  %876 = vmatprep.subr.mxu0 0.0
  %877 = vmatpush2.msra.mxu0 0.0
  %878 = vmatprep.subr.mxu0 0.0
  %879 = vmatpush2.msra.mxu0 0.0
  %880 = vmatprep.subr.mxu0 0.0
  %881 = vmatpush2.msra.mxu0 0.0
  %882 = vmatprep.subr.mxu0 0.0
  %883 = vmatpush2.msra.mxu0 0.0
  %884 = vmatprep.subr.mxu0 0.0
  %885 = vmatpush2.msra.mxu0 0.0
  %886 = vmatprep.subr.mxu0 0.0
  %887 = vmatpush2.msra.mxu0 0.0
  %888 = vmatprep.subr.mxu0 0.0
  %889 = vmatpush2.msra.mxu0 0.0
  %890 = vmatprep.mubr.f32.mxu0 0.0
  %891 = vmatmul.mubr.f32.gmra.mxu0 %v824
  %v892 = vpop.f32.mrf.mxu0
  %v893 = vadd.f32 0.0, %v892
  %v894 = vpop.f32.mrf.mxu0
  %895 = vdwg.mxu0
  %v896 = vadd.f32 %v820, %v893
  %v897 = vmul.f32 %v896, %v28
  %v898 = vtanh.pop %v897
  %v899 = vmul.f32 %v898, 0.5
  %v900 = vadd.f32 %v899, 0.5
  %v901 = vsel %vm27, %v898, %v900
  %v902 = vmul.f32 %v901, %v813
  %904 = vrot.lane.b32.xlu0 %v901, 64
  %v905 = vpop.permute.xlu0 %904
  %v907 = vmul.f32 %v901, %v905
  %909 = vrot.lane.b32.xlu0 %v907, 32
  %v910 = vpop.permute.xlu0 %909
  %v912 = vadd.f32 %v902, %v910
  %v913 = vtanh.pop %v912
  %915 = vrot.lane.b32.xlu0 %v913, 64
  %v916 = vpop.permute.xlu0 %915
  %v918 = vmul.f32 %v901, %v916
  %v919 = vld [vmem:[%s0 + $0x12] sm:$0x3]
  %921 = vrot.lane.b32.xlu0 %v918, 32
  %v922 = vpop.permute.xlu0 %921
  %v923 = vsel %vm30, %v922, 0
  %925 = vmatprep.subr.mxu0 0.0
  %926 = vmatpush1.msra.mxu0 0.0
  %927 = vmatprep.subr.mxu0 0.0
  %928 = vmatpush1.msra.mxu0 0.0
  %929 = vmatprep.subr.mxu0 0.0
  %930 = vmatpush1.msra.mxu0 0.0
  %931 = vmatprep.subr.mxu0 0.0
  %932 = vmatpush1.msra.mxu0 0.0
  %933 = vmatprep.subr.mxu0 0.0
  %934 = vmatpush1.msra.mxu0 0.0
  %935 = vmatprep.subr.mxu0 0.0
  %936 = vmatpush1.msra.mxu0 0.0
  %937 = vmatprep.subr.mxu0 0.0
  %938 = vmatpush1.msra.mxu0 0.0
  %939 = vmatprep.subr.mxu0 0.0
  %940 = vmatpush1.msra.mxu0 0.0
  %941 = vmatprep.subr.mxu0 0.0
  %942 = vmatpush1.msra.mxu0 0.0
  %943 = vmatprep.subr.mxu0 0.0
  %944 = vmatpush1.msra.mxu0 0.0
  %945 = vmatprep.subr.mxu0 0.0
  %946 = vmatpush1.msra.mxu0 0.0
  %947 = vmatprep.subr.mxu0 0.0
  %948 = vmatpush1.msra.mxu0 0.0
  %949 = vmatprep.subr.mxu0 0.0
  %950 = vmatpush1.msra.mxu0 %v22
  %951 = vmatprep.subr.mxu0 0.0
  %952 = vmatpush1.msra.mxu0 %v21
  %953 = vmatprep.subr.mxu0 0.0
  %954 = vmatpush1.msra.mxu0 %v20
  %955 = vmatprep.subr.mxu0 0.0
  %956 = vmatpush1.msra.mxu0 %v19
  %957 = vmatprep.subr.mxu0 0.0
  %958 = vmatpush2.msra.mxu0 0.0
  %959 = vmatprep.subr.mxu0 0.0
  %960 = vmatpush2.msra.mxu0 0.0
  %961 = vmatprep.subr.mxu0 0.0
  %962 = vmatpush2.msra.mxu0 0.0
  %963 = vmatprep.subr.mxu0 0.0
  %964 = vmatpush2.msra.mxu0 0.0
  %965 = vmatprep.subr.mxu0 0.0
  %966 = vmatpush2.msra.mxu0 0.0
  %967 = vmatprep.subr.mxu0 0.0
  %968 = vmatpush2.msra.mxu0 0.0
  %969 = vmatprep.subr.mxu0 0.0
  %970 = vmatpush2.msra.mxu0 0.0
  %971 = vmatprep.subr.mxu0 0.0
  %972 = vmatpush2.msra.mxu0 0.0
  %973 = vmatprep.subr.mxu0 0.0
  %974 = vmatpush2.msra.mxu0 0.0
  %975 = vmatprep.subr.mxu0 0.0
  %976 = vmatpush2.msra.mxu0 0.0
  %977 = vmatprep.subr.mxu0 0.0
  %978 = vmatpush2.msra.mxu0 0.0
  %979 = vmatprep.subr.mxu0 0.0
  %980 = vmatpush2.msra.mxu0 0.0
  %981 = vmatprep.subr.mxu0 0.0
  %982 = vmatpush2.msra.mxu0 0.0
  %983 = vmatprep.subr.mxu0 0.0
  %984 = vmatpush2.msra.mxu0 0.0
  %985 = vmatprep.subr.mxu0 0.0
  %986 = vmatpush2.msra.mxu0 0.0
  %987 = vmatprep.subr.mxu0 0.0
  %988 = vmatpush2.msra.mxu0 0.0
  %989 = vmatprep.mubr.f32.mxu0 0.0
  %990 = vmatmul.mubr.f32.gmra.mxu0 %v923
  %v991 = vpop.f32.mrf.mxu0
  %v992 = vadd.f32 0.0, %v991
  %v993 = vpop.f32.mrf.mxu0
  %994 = vdwg.mxu0
  %v995 = vadd.f32 %v919, %v992
  %v996 = vmul.f32 %v995, %v28
  %v997 = vtanh.pop %v996
  %v998 = vmul.f32 %v997, 0.5
  %v999 = vadd.f32 %v998, 0.5
  %v1000 = vsel %vm27, %v997, %v999
  %v1001 = vmul.f32 %v1000, %v912
  %1003 = vrot.lane.b32.xlu0 %v1000, 64
  %v1004 = vpop.permute.xlu0 %1003
  %v1006 = vmul.f32 %v1000, %v1004
  %1008 = vrot.lane.b32.xlu0 %v1006, 32
  %v1009 = vpop.permute.xlu0 %1008
  %v1011 = vadd.f32 %v1001, %v1009
  %v1012 = vtanh.pop %v1011
  %1014 = vrot.lane.b32.xlu0 %v1012, 64
  %v1015 = vpop.permute.xlu0 %1014
  %v1017 = vmul.f32 %v1000, %v1015
  %v1018 = vld [vmem:[%s0 + $0x14] sm:$0x3]
  %1020 = vrot.lane.b32.xlu0 %v1017, 32
  %v1021 = vpop.permute.xlu0 %1020
  %v1022 = vsel %vm30, %v1021, 0
  %1024 = vmatprep.subr.mxu0 0.0
  %1025 = vmatpush1.msra.mxu0 0.0
  %1026 = vmatprep.subr.mxu0 0.0
  %1027 = vmatpush1.msra.mxu0 0.0
  %1028 = vmatprep.subr.mxu0 0.0
  %1029 = vmatpush1.msra.mxu0 0.0
  %1030 = vmatprep.subr.mxu0 0.0
  %1031 = vmatpush1.msra.mxu0 0.0
  %1032 = vmatprep.subr.mxu0 0.0
  %1033 = vmatpush1.msra.mxu0 0.0
  %1034 = vmatprep.subr.mxu0 0.0
  %1035 = vmatpush1.msra.mxu0 0.0
  %1036 = vmatprep.subr.mxu0 0.0
  %1037 = vmatpush1.msra.mxu0 0.0
  %1038 = vmatprep.subr.mxu0 0.0
  %1039 = vmatpush1.msra.mxu0 0.0
  %1040 = vmatprep.subr.mxu0 0.0
  %1041 = vmatpush1.msra.mxu0 0.0
  %1042 = vmatprep.subr.mxu0 0.0
  %1043 = vmatpush1.msra.mxu0 0.0
  %1044 = vmatprep.subr.mxu0 0.0
  %1045 = vmatpush1.msra.mxu0 0.0
  %1046 = vmatprep.subr.mxu0 0.0
  %1047 = vmatpush1.msra.mxu0 0.0
  %1048 = vmatprep.subr.mxu0 0.0
  %1049 = vmatpush1.msra.mxu0 %v22
  %1050 = vmatprep.subr.mxu0 0.0
  %1051 = vmatpush1.msra.mxu0 %v21
  %1052 = vmatprep.subr.mxu0 0.0
  %1053 = vmatpush1.msra.mxu0 %v20
  %1054 = vmatprep.subr.mxu0 0.0
  %1055 = vmatpush1.msra.mxu0 %v19
  %1056 = vmatprep.subr.mxu0 0.0
  %1057 = vmatpush2.msra.mxu0 0.0
  %1058 = vmatprep.subr.mxu0 0.0
  %1059 = vmatpush2.msra.mxu0 0.0
  %1060 = vmatprep.subr.mxu0 0.0
  %1061 = vmatpush2.msra.mxu0 0.0
  %1062 = vmatprep.subr.mxu0 0.0
  %1063 = vmatpush2.msra.mxu0 0.0
  %1064 = vmatprep.subr.mxu0 0.0
  %1065 = vmatpush2.msra.mxu0 0.0
  %1066 = vmatprep.subr.mxu0 0.0
  %1067 = vmatpush2.msra.mxu0 0.0
  %1068 = vmatprep.subr.mxu0 0.0
  %1069 = vmatpush2.msra.mxu0 0.0
  %1070 = vmatprep.subr.mxu0 0.0
  %1071 = vmatpush2.msra.mxu0 0.0
  %1072 = vmatprep.subr.mxu0 0.0
  %1073 = vmatpush2.msra.mxu0 0.0
  %1074 = vmatprep.subr.mxu0 0.0
  %1075 = vmatpush2.msra.mxu0 0.0
  %1076 = vmatprep.subr.mxu0 0.0
  %1077 = vmatpush2.msra.mxu0 0.0
  %1078 = vmatprep.subr.mxu0 0.0
  %1079 = vmatpush2.msra.mxu0 0.0
  %1080 = vmatprep.subr.mxu0 0.0
  %1081 = vmatpush2.msra.mxu0 0.0
  %1082 = vmatprep.subr.mxu0 0.0
  %1083 = vmatpush2.msra.mxu0 0.0
  %1084 = vmatprep.subr.mxu0 0.0
  %1085 = vmatpush2.msra.mxu0 0.0
  %1086 = vmatprep.subr.mxu0 0.0
  %1087 = vmatpush2.msra.mxu0 0.0
  %1088 = vmatprep.mubr.f32.mxu0 0.0
  %1089 = vmatmul.mubr.f32.gmra.mxu0 %v1022
  %v1090 = vpop.f32.mrf.mxu0
  %v1091 = vadd.f32 0.0, %v1090
  %v1092 = vpop.f32.mrf.mxu0
  %1093 = vdwg.mxu0
  %v1094 = vadd.f32 %v1018, %v1091
  %v1095 = vmul.f32 %v1094, %v28
  %v1096 = vtanh.pop %v1095
  %v1097 = vmul.f32 %v1096, 0.5
  %v1098 = vadd.f32 %v1097, 0.5
  %v1099 = vsel %vm27, %v1096, %v1098
  %v1100 = vmul.f32 %v1099, %v1011
  %1102 = vrot.lane.b32.xlu0 %v1099, 64
  %v1103 = vpop.permute.xlu0 %1102
  %v1105 = vmul.f32 %v1099, %v1103
  %1107 = vrot.lane.b32.xlu0 %v1105, 32
  %v1108 = vpop.permute.xlu0 %1107
  %v1110 = vadd.f32 %v1100, %v1108
  %v1111 = vtanh.pop %v1110
  %1113 = vrot.lane.b32.xlu0 %v1111, 64
  %v1114 = vpop.permute.xlu0 %1113
  %v1116 = vmul.f32 %v1099, %v1114
  %v1117 = vld [vmem:[%s0 + $0x16] sm:$0x3]
  %1119 = vrot.lane.b32.xlu0 %v1116, 32
  %v1120 = vpop.permute.xlu0 %1119
  %v1121 = vsel %vm30, %v1120, 0
  %1123 = vmatprep.subr.mxu0 0.0
  %1124 = vmatpush1.msra.mxu0 0.0
  %1125 = vmatprep.subr.mxu0 0.0
  %1126 = vmatpush1.msra.mxu0 0.0
  %1127 = vmatprep.subr.mxu0 0.0
  %1128 = vmatpush1.msra.mxu0 0.0
  %1129 = vmatprep.subr.mxu0 0.0
  %1130 = vmatpush1.msra.mxu0 0.0
  %1131 = vmatprep.subr.mxu0 0.0
  %1132 = vmatpush1.msra.mxu0 0.0
  %1133 = vmatprep.subr.mxu0 0.0
  %1134 = vmatpush1.msra.mxu0 0.0
  %1135 = vmatprep.subr.mxu0 0.0
  %1136 = vmatpush1.msra.mxu0 0.0
  %1137 = vmatprep.subr.mxu0 0.0
  %1138 = vmatpush1.msra.mxu0 0.0
  %1139 = vmatprep.subr.mxu0 0.0
  %1140 = vmatpush1.msra.mxu0 0.0
  %1141 = vmatprep.subr.mxu0 0.0
  %1142 = vmatpush1.msra.mxu0 0.0
  %1143 = vmatprep.subr.mxu0 0.0
  %1144 = vmatpush1.msra.mxu0 0.0
  %1145 = vmatprep.subr.mxu0 0.0
  %1146 = vmatpush1.msra.mxu0 0.0
  %1147 = vmatprep.subr.mxu0 0.0
  %1148 = vmatpush1.msra.mxu0 %v22
  %1149 = vmatprep.subr.mxu0 0.0
  %1150 = vmatpush1.msra.mxu0 %v21
  %1151 = vmatprep.subr.mxu0 0.0
  %1152 = vmatpush1.msra.mxu0 %v20
  %1153 = vmatprep.subr.mxu0 0.0
  %1154 = vmatpush1.msra.mxu0 %v19
  %1155 = vmatprep.subr.mxu0 0.0
  %1156 = vmatpush2.msra.mxu0 0.0
  %1157 = vmatprep.subr.mxu0 0.0
  %1158 = vmatpush2.msra.mxu0 0.0
  %1159 = vmatprep.subr.mxu0 0.0
  %1160 = vmatpush2.msra.mxu0 0.0
  %1161 = vmatprep.subr.mxu0 0.0
  %1162 = vmatpush2.msra.mxu0 0.0
  %1163 = vmatprep.subr.mxu0 0.0
  %1164 = vmatpush2.msra.mxu0 0.0
  %1165 = vmatprep.subr.mxu0 0.0
  %1166 = vmatpush2.msra.mxu0 0.0
  %1167 = vmatprep.subr.mxu0 0.0
  %1168 = vmatpush2.msra.mxu0 0.0
  %1169 = vmatprep.subr.mxu0 0.0
  %1170 = vmatpush2.msra.mxu0 0.0
  %1171 = vmatprep.subr.mxu0 0.0
  %1172 = vmatpush2.msra.mxu0 0.0
  %1173 = vmatprep.subr.mxu0 0.0
  %1174 = vmatpush2.msra.mxu0 0.0
  %1175 = vmatprep.subr.mxu0 0.0
  %1176 = vmatpush2.msra.mxu0 0.0
  %1177 = vmatprep.subr.mxu0 0.0
  %1178 = vmatpush2.msra.mxu0 0.0
  %1179 = vmatprep.subr.mxu0 0.0
  %1180 = vmatpush2.msra.mxu0 0.0
  %1181 = vmatprep.subr.mxu0 0.0
  %1182 = vmatpush2.msra.mxu0 0.0
  %1183 = vmatprep.subr.mxu0 0.0
  %1184 = vmatpush2.msra.mxu0 0.0
  %1185 = vmatprep.subr.mxu0 0.0
  %1186 = vmatpush2.msra.mxu0 0.0
  %1187 = vmatprep.mubr.f32.mxu0 0.0
  %1188 = vmatmul.mubr.f32.gmra.mxu0 %v1121
  %v1189 = vpop.f32.mrf.mxu0
  %v1190 = vadd.f32 0.0, %v1189
  %v1191 = vpop.f32.mrf.mxu0
  %1192 = vdwg.mxu0
  %v1193 = vadd.f32 %v1117, %v1190
  %v1194 = vmul.f32 %v1193, %v28
  %v1195 = vtanh.pop %v1194
  %v1196 = vmul.f32 %v1195, 0.5
  %v1197 = vadd.f32 %v1196, 0.5
  %v1198 = vsel %vm27, %v1195, %v1197
  %v1199 = vmul.f32 %v1198, %v1110
  %1201 = vrot.lane.b32.xlu0 %v1198, 64
  %v1202 = vpop.permute.xlu0 %1201
  %v1204 = vmul.f32 %v1198, %v1202
  %1206 = vrot.lane.b32.xlu0 %v1204, 32
  %v1207 = vpop.permute.xlu0 %1206
  %v1209 = vadd.f32 %v1199, %v1207
  %v1210 = vtanh.pop %v1209
  %1212 = vrot.lane.b32.xlu0 %v1210, 64
  %v1213 = vpop.permute.xlu0 %1212
  %v1215 = vmul.f32 %v1198, %v1213
  %v1216 = vld [vmem:[%s0 + $0x18] sm:$0x3]
  %1218 = vrot.lane.b32.xlu0 %v1215, 32
  %v1219 = vpop.permute.xlu0 %1218
  %v1220 = vsel %vm30, %v1219, 0
  %1222 = vmatprep.subr.mxu0 0.0
  %1223 = vmatpush1.msra.mxu0 0.0
  %1224 = vmatprep.subr.mxu0 0.0
  %1225 = vmatpush1.msra.mxu0 0.0
  %1226 = vmatprep.subr.mxu0 0.0
  %1227 = vmatpush1.msra.mxu0 0.0
  %1228 = vmatprep.subr.mxu0 0.0
  %1229 = vmatpush1.msra.mxu0 0.0
  %1230 = vmatprep.subr.mxu0 0.0
  %1231 = vmatpush1.msra.mxu0 0.0
  %1232 = vmatprep.subr.mxu0 0.0
  %1233 = vmatpush1.msra.mxu0 0.0
  %1234 = vmatprep.subr.mxu0 0.0
  %1235 = vmatpush1.msra.mxu0 0.0
  %1236 = vmatprep.subr.mxu0 0.0
  %1237 = vmatpush1.msra.mxu0 0.0
  %1238 = vmatprep.subr.mxu0 0.0
  %1239 = vmatpush1.msra.mxu0 0.0
  %1240 = vmatprep.subr.mxu0 0.0
  %1241 = vmatpush1.msra.mxu0 0.0
  %1242 = vmatprep.subr.mxu0 0.0
  %1243 = vmatpush1.msra.mxu0 0.0
  %1244 = vmatprep.subr.mxu0 0.0
  %1245 = vmatpush1.msra.mxu0 0.0
  %1246 = vmatprep.subr.mxu0 0.0
  %1247 = vmatpush1.msra.mxu0 %v22
  %1248 = vmatprep.subr.mxu0 0.0
  %1249 = vmatpush1.msra.mxu0 %v21
  %1250 = vmatprep.subr.mxu0 0.0
  %1251 = vmatpush1.msra.mxu0 %v20
  %1252 = vmatprep.subr.mxu0 0.0
  %1253 = vmatpush1.msra.mxu0 %v19
  %1254 = vmatprep.subr.mxu0 0.0
  %1255 = vmatpush2.msra.mxu0 0.0
  %1256 = vmatprep.subr.mxu0 0.0
  %1257 = vmatpush2.msra.mxu0 0.0
  %1258 = vmatprep.subr.mxu0 0.0
  %1259 = vmatpush2.msra.mxu0 0.0
  %1260 = vmatprep.subr.mxu0 0.0
  %1261 = vmatpush2.msra.mxu0 0.0
  %1262 = vmatprep.subr.mxu0 0.0
  %1263 = vmatpush2.msra.mxu0 0.0
  %1264 = vmatprep.subr.mxu0 0.0
  %1265 = vmatpush2.msra.mxu0 0.0
  %1266 = vmatprep.subr.mxu0 0.0
  %1267 = vmatpush2.msra.mxu0 0.0
  %1268 = vmatprep.subr.mxu0 0.0
  %1269 = vmatpush2.msra.mxu0 0.0
  %1270 = vmatprep.subr.mxu0 0.0
  %1271 = vmatpush2.msra.mxu0 0.0
  %1272 = vmatprep.subr.mxu0 0.0
  %1273 = vmatpush2.msra.mxu0 0.0
  %1274 = vmatprep.subr.mxu0 0.0
  %1275 = vmatpush2.msra.mxu0 0.0
  %1276 = vmatprep.subr.mxu0 0.0
  %1277 = vmatpush2.msra.mxu0 0.0
  %1278 = vmatprep.subr.mxu0 0.0
  %1279 = vmatpush2.msra.mxu0 0.0
  %1280 = vmatprep.subr.mxu0 0.0
  %1281 = vmatpush2.msra.mxu0 0.0
  %1282 = vmatprep.subr.mxu0 0.0
  %1283 = vmatpush2.msra.mxu0 0.0
  %1284 = vmatprep.subr.mxu0 0.0
  %1285 = vmatpush2.msra.mxu0 0.0
  %1286 = vmatprep.mubr.f32.mxu0 0.0
  %1287 = vmatmul.mubr.f32.gmra.mxu0 %v1220
  %v1288 = vpop.f32.mrf.mxu0
  %v1289 = vadd.f32 0.0, %v1288
  %v1290 = vpop.f32.mrf.mxu0
  %1291 = vdwg.mxu0
  %v1292 = vadd.f32 %v1216, %v1289
  %v1293 = vmul.f32 %v1292, %v28
  %v1294 = vtanh.pop %v1293
  %v1295 = vmul.f32 %v1294, 0.5
  %v1296 = vadd.f32 %v1295, 0.5
  %v1297 = vsel %vm27, %v1294, %v1296
  %v1298 = vmul.f32 %v1297, %v1209
  %1300 = vrot.lane.b32.xlu0 %v1297, 64
  %v1301 = vpop.permute.xlu0 %1300
  %v1303 = vmul.f32 %v1297, %v1301
  %1305 = vrot.lane.b32.xlu0 %v1303, 32
  %v1306 = vpop.permute.xlu0 %1305
  %v1308 = vadd.f32 %v1298, %v1306
  %v1309 = vtanh.pop %v1308
  %1311 = vrot.lane.b32.xlu0 %v1309, 64
  %v1312 = vpop.permute.xlu0 %1311
  %v1314 = vmul.f32 %v1297, %v1312
  %v1315 = vld [vmem:[%s0 + $0x1a] sm:$0x3]
  %1317 = vrot.lane.b32.xlu0 %v1314, 32
  %v1318 = vpop.permute.xlu0 %1317
  %v1319 = vsel %vm30, %v1318, 0
  %1321 = vmatprep.subr.mxu0 0.0
  %1322 = vmatpush1.msra.mxu0 0.0
  %1323 = vmatprep.subr.mxu0 0.0
  %1324 = vmatpush1.msra.mxu0 0.0
  %1325 = vmatprep.subr.mxu0 0.0
  %1326 = vmatpush1.msra.mxu0 0.0
  %1327 = vmatprep.subr.mxu0 0.0
  %1328 = vmatpush1.msra.mxu0 0.0
  %1329 = vmatprep.subr.mxu0 0.0
  %1330 = vmatpush1.msra.mxu0 0.0
  %1331 = vmatprep.subr.mxu0 0.0
  %1332 = vmatpush1.msra.mxu0 0.0
  %1333 = vmatprep.subr.mxu0 0.0
  %1334 = vmatpush1.msra.mxu0 0.0
  %1335 = vmatprep.subr.mxu0 0.0
  %1336 = vmatpush1.msra.mxu0 0.0
  %1337 = vmatprep.subr.mxu0 0.0
  %1338 = vmatpush1.msra.mxu0 0.0
  %1339 = vmatprep.subr.mxu0 0.0
  %1340 = vmatpush1.msra.mxu0 0.0
  %1341 = vmatprep.subr.mxu0 0.0
  %1342 = vmatpush1.msra.mxu0 0.0
  %1343 = vmatprep.subr.mxu0 0.0
  %1344 = vmatpush1.msra.mxu0 0.0
  %1345 = vmatprep.subr.mxu0 0.0
  %1346 = vmatpush1.msra.mxu0 %v22
  %1347 = vmatprep.subr.mxu0 0.0
  %1348 = vmatpush1.msra.mxu0 %v21
  %1349 = vmatprep.subr.mxu0 0.0
  %1350 = vmatpush1.msra.mxu0 %v20
  %1351 = vmatprep.subr.mxu0 0.0
  %1352 = vmatpush1.msra.mxu0 %v19
  %1353 = vmatprep.subr.mxu0 0.0
  %1354 = vmatpush2.msra.mxu0 0.0
  %1355 = vmatprep.subr.mxu0 0.0
  %1356 = vmatpush2.msra.mxu0 0.0
  %1357 = vmatprep.subr.mxu0 0.0
  %1358 = vmatpush2.msra.mxu0 0.0
  %1359 = vmatprep.subr.mxu0 0.0
  %1360 = vmatpush2.msra.mxu0 0.0
  %1361 = vmatprep.subr.mxu0 0.0
  %1362 = vmatpush2.msra.mxu0 0.0
  %1363 = vmatprep.subr.mxu0 0.0
  %1364 = vmatpush2.msra.mxu0 0.0
  %1365 = vmatprep.subr.mxu0 0.0
  %1366 = vmatpush2.msra.mxu0 0.0
  %1367 = vmatprep.subr.mxu0 0.0
  %1368 = vmatpush2.msra.mxu0 0.0
  %1369 = vmatprep.subr.mxu0 0.0
  %1370 = vmatpush2.msra.mxu0 0.0
  %1371 = vmatprep.subr.mxu0 0.0
  %1372 = vmatpush2.msra.mxu0 0.0
  %1373 = vmatprep.subr.mxu0 0.0
  %1374 = vmatpush2.msra.mxu0 0.0
  %1375 = vmatprep.subr.mxu0 0.0
  %1376 = vmatpush2.msra.mxu0 0.0
  %1377 = vmatprep.subr.mxu0 0.0
  %1378 = vmatpush2.msra.mxu0 0.0
  %1379 = vmatprep.subr.mxu0 0.0
  %1380 = vmatpush2.msra.mxu0 0.0
  %1381 = vmatprep.subr.mxu0 0.0
  %1382 = vmatpush2.msra.mxu0 0.0
  %1383 = vmatprep.subr.mxu0 0.0
  %1384 = vmatpush2.msra.mxu0 0.0
  %1385 = vmatprep.mubr.f32.mxu0 0.0
  %1386 = vmatmul.mubr.f32.gmra.mxu0 %v1319
  %v1387 = vpop.f32.mrf.mxu0
  %v1388 = vadd.f32 0.0, %v1387
  %v1389 = vpop.f32.mrf.mxu0
  %1390 = vdwg.mxu0
  %v1391 = vadd.f32 %v1315, %v1388
  %v1392 = vmul.f32 %v1391, %v28
  %v1393 = vtanh.pop %v1392
  %v1394 = vmul.f32 %v1393, 0.5
  %v1395 = vadd.f32 %v1394, 0.5
  %v1396 = vsel %vm27, %v1393, %v1395
  %v1397 = vmul.f32 %v1396, %v1308
  %1399 = vrot.lane.b32.xlu0 %v1396, 64
  %v1400 = vpop.permute.xlu0 %1399
  %v1402 = vmul.f32 %v1396, %v1400
  %1404 = vrot.lane.b32.xlu0 %v1402, 32
  %v1405 = vpop.permute.xlu0 %1404
  %v1407 = vadd.f32 %v1397, %v1405
  %v1408 = vtanh.pop %v1407
  %1410 = vrot.lane.b32.xlu0 %v1408, 64
  %v1411 = vpop.permute.xlu0 %1410
  %v1413 = vmul.f32 %v1396, %v1411
  %v1414 = vld [vmem:[%s0 + $0x1c] sm:$0x3]
  %1416 = vrot.lane.b32.xlu0 %v1413, 32
  %v1417 = vpop.permute.xlu0 %1416
  %v1418 = vsel %vm30, %v1417, 0
  %1420 = vmatprep.subr.mxu0 0.0
  %1421 = vmatpush1.msra.mxu0 0.0
  %1422 = vmatprep.subr.mxu0 0.0
  %1423 = vmatpush1.msra.mxu0 0.0
  %1424 = vmatprep.subr.mxu0 0.0
  %1425 = vmatpush1.msra.mxu0 0.0
  %1426 = vmatprep.subr.mxu0 0.0
  %1427 = vmatpush1.msra.mxu0 0.0
  %1428 = vmatprep.subr.mxu0 0.0
  %1429 = vmatpush1.msra.mxu0 0.0
  %1430 = vmatprep.subr.mxu0 0.0
  %1431 = vmatpush1.msra.mxu0 0.0
  %1432 = vmatprep.subr.mxu0 0.0
  %1433 = vmatpush1.msra.mxu0 0.0
  %1434 = vmatprep.subr.mxu0 0.0
  %1435 = vmatpush1.msra.mxu0 0.0
  %1436 = vmatprep.subr.mxu0 0.0
  %1437 = vmatpush1.msra.mxu0 0.0
  %1438 = vmatprep.subr.mxu0 0.0
  %1439 = vmatpush1.msra.mxu0 0.0
  %1440 = vmatprep.subr.mxu0 0.0
  %1441 = vmatpush1.msra.mxu0 0.0
  %1442 = vmatprep.subr.mxu0 0.0
  %1443 = vmatpush1.msra.mxu0 0.0
  %1444 = vmatprep.subr.mxu0 0.0
  %1445 = vmatpush1.msra.mxu0 %v22
  %1446 = vmatprep.subr.mxu0 0.0
  %1447 = vmatpush1.msra.mxu0 %v21
  %1448 = vmatprep.subr.mxu0 0.0
  %1449 = vmatpush1.msra.mxu0 %v20
  %1450 = vmatprep.subr.mxu0 0.0
  %1451 = vmatpush1.msra.mxu0 %v19
  %1452 = vmatprep.subr.mxu0 0.0
  %1453 = vmatpush2.msra.mxu0 0.0
  %1454 = vmatprep.subr.mxu0 0.0
  %1455 = vmatpush2.msra.mxu0 0.0
  %1456 = vmatprep.subr.mxu0 0.0
  %1457 = vmatpush2.msra.mxu0 0.0
  %1458 = vmatprep.subr.mxu0 0.0
  %1459 = vmatpush2.msra.mxu0 0.0
  %1460 = vmatprep.subr.mxu0 0.0
  %1461 = vmatpush2.msra.mxu0 0.0
  %1462 = vmatprep.subr.mxu0 0.0
  %1463 = vmatpush2.msra.mxu0 0.0
  %1464 = vmatprep.subr.mxu0 0.0
  %1465 = vmatpush2.msra.mxu0 0.0
  %1466 = vmatprep.subr.mxu0 0.0
  %1467 = vmatpush2.msra.mxu0 0.0
  %1468 = vmatprep.subr.mxu0 0.0
  %1469 = vmatpush2.msra.mxu0 0.0
  %1470 = vmatprep.subr.mxu0 0.0
  %1471 = vmatpush2.msra.mxu0 0.0
  %1472 = vmatprep.subr.mxu0 0.0
  %1473 = vmatpush2.msra.mxu0 0.0
  %1474 = vmatprep.subr.mxu0 0.0
  %1475 = vmatpush2.msra.mxu0 0.0
  %1476 = vmatprep.subr.mxu0 0.0
  %1477 = vmatpush2.msra.mxu0 0.0
  %1478 = vmatprep.subr.mxu0 0.0
  %1479 = vmatpush2.msra.mxu0 0.0
  %1480 = vmatprep.subr.mxu0 0.0
  %1481 = vmatpush2.msra.mxu0 0.0
  %1482 = vmatprep.subr.mxu0 0.0
  %1483 = vmatpush2.msra.mxu0 0.0
  %1484 = vmatprep.mubr.f32.mxu0 0.0
  %1485 = vmatmul.mubr.f32.gmra.mxu0 %v1418
  %v1486 = vpop.f32.mrf.mxu0
  %v1487 = vadd.f32 0.0, %v1486
  %v1488 = vpop.f32.mrf.mxu0
  %1489 = vdwg.mxu0
  %v1490 = vadd.f32 %v1414, %v1487
  %v1491 = vmul.f32 %v1490, %v28
  %v1492 = vtanh.pop %v1491
  %v1493 = vmul.f32 %v1492, 0.5
  %v1494 = vadd.f32 %v1493, 0.5
  %v1495 = vsel %vm27, %v1492, %v1494
  %v1496 = vmul.f32 %v1495, %v1407
  %1498 = vrot.lane.b32.xlu0 %v1495, 64
  %v1499 = vpop.permute.xlu0 %1498
  %v1501 = vmul.f32 %v1495, %v1499
  %1503 = vrot.lane.b32.xlu0 %v1501, 32
  %v1504 = vpop.permute.xlu0 %1503
  %v1506 = vadd.f32 %v1496, %v1504
  %v1507 = vtanh.pop %v1506
  %1509 = vrot.lane.b32.xlu0 %v1507, 64
  %v1510 = vpop.permute.xlu0 %1509
  %v1512 = vmul.f32 %v1495, %v1510
  %v1513 = vld [vmem:[%s0 + $0x1e] sm:$0x3]
  %1515 = vrot.lane.b32.xlu0 %v1512, 32
  %v1516 = vpop.permute.xlu0 %1515
  %v1517 = vsel %vm30, %v1516, 0
  %1519 = vmatprep.subr.mxu0 0.0
  %1520 = vmatpush1.msra.mxu0 0.0
  %1521 = vmatprep.subr.mxu0 0.0
  %1522 = vmatpush1.msra.mxu0 0.0
  %1523 = vmatprep.subr.mxu0 0.0
  %1524 = vmatpush1.msra.mxu0 0.0
  %1525 = vmatprep.subr.mxu0 0.0
  %1526 = vmatpush1.msra.mxu0 0.0
  %1527 = vmatprep.subr.mxu0 0.0
  %1528 = vmatpush1.msra.mxu0 0.0
  %1529 = vmatprep.subr.mxu0 0.0
  %1530 = vmatpush1.msra.mxu0 0.0
  %1531 = vmatprep.subr.mxu0 0.0
  %1532 = vmatpush1.msra.mxu0 0.0
  %1533 = vmatprep.subr.mxu0 0.0
  %1534 = vmatpush1.msra.mxu0 0.0
  %1535 = vmatprep.subr.mxu0 0.0
  %1536 = vmatpush1.msra.mxu0 0.0
  %1537 = vmatprep.subr.mxu0 0.0
  %1538 = vmatpush1.msra.mxu0 0.0
  %1539 = vmatprep.subr.mxu0 0.0
  %1540 = vmatpush1.msra.mxu0 0.0
  %1541 = vmatprep.subr.mxu0 0.0
  %1542 = vmatpush1.msra.mxu0 0.0
  %1543 = vmatprep.subr.mxu0 0.0
  %1544 = vmatpush1.msra.mxu0 %v22
  %1545 = vmatprep.subr.mxu0 0.0
  %1546 = vmatpush1.msra.mxu0 %v21
  %1547 = vmatprep.subr.mxu0 0.0
  %1548 = vmatpush1.msra.mxu0 %v20
  %1549 = vmatprep.subr.mxu0 0.0
  %1550 = vmatpush1.msra.mxu0 %v19
  %1551 = vmatprep.subr.mxu0 0.0
  %1552 = vmatpush2.msra.mxu0 0.0
  %1553 = vmatprep.subr.mxu0 0.0
  %1554 = vmatpush2.msra.mxu0 0.0
  %1555 = vmatprep.subr.mxu0 0.0
  %1556 = vmatpush2.msra.mxu0 0.0
  %1557 = vmatprep.subr.mxu0 0.0
  %1558 = vmatpush2.msra.mxu0 0.0
  %1559 = vmatprep.subr.mxu0 0.0
  %1560 = vmatpush2.msra.mxu0 0.0
  %1561 = vmatprep.subr.mxu0 0.0
  %1562 = vmatpush2.msra.mxu0 0.0
  %1563 = vmatprep.subr.mxu0 0.0
  %1564 = vmatpush2.msra.mxu0 0.0
  %1565 = vmatprep.subr.mxu0 0.0
  %1566 = vmatpush2.msra.mxu0 0.0
  %1567 = vmatprep.subr.mxu0 0.0
  %1568 = vmatpush2.msra.mxu0 0.0
  %1569 = vmatprep.subr.mxu0 0.0
  %1570 = vmatpush2.msra.mxu0 0.0
  %1571 = vmatprep.subr.mxu0 0.0
  %1572 = vmatpush2.msra.mxu0 0.0
  %1573 = vmatprep.subr.mxu0 0.0
  %1574 = vmatpush2.msra.mxu0 0.0
  %1575 = vmatprep.subr.mxu0 0.0
  %1576 = vmatpush2.msra.mxu0 0.0
  %1577 = vmatprep.subr.mxu0 0.0
  %1578 = vmatpush2.msra.mxu0 0.0
  %1579 = vmatprep.subr.mxu0 0.0
  %1580 = vmatpush2.msra.mxu0 0.0
  %1581 = vmatprep.subr.mxu0 0.0
  %1582 = vmatpush2.msra.mxu0 0.0
  %1583 = vmatprep.mubr.f32.mxu0 0.0
  %1584 = vmatmul.mubr.f32.gmra.mxu0 %v1517
  %v1585 = vpop.f32.mrf.mxu0
  %v1586 = vadd.f32 0.0, %v1585
  %v1587 = vpop.f32.mrf.mxu0
  %1588 = vdwg.mxu0
  %v1589 = vadd.f32 %v1513, %v1586
  %v1590 = vmul.f32 %v1589, %v28
  %v1591 = vtanh.pop %v1590
  %v1592 = vmul.f32 %v1591, 0.5
  %v1593 = vadd.f32 %v1592, 0.5
  %v1594 = vsel %vm27, %v1591, %v1593
  %v1595 = vmul.f32 %v1594, %v1506
  %1597 = vrot.lane.b32.xlu0 %v1594, 64
  %v1598 = vpop.permute.xlu0 %1597
  %v1600 = vmul.f32 %v1594, %v1598
  %1602 = vrot.lane.b32.xlu0 %v1600, 32
  %v1603 = vpop.permute.xlu0 %1602
  %v1605 = vadd.f32 %v1595, %v1603
  %v1606 = vtanh.pop %v1605
  %1608 = vrot.lane.b32.xlu0 %v1606, 64
  %v1609 = vpop.permute.xlu0 %1608
  %v1611 = vmul.f32 %v1594, %v1609
  %p1612 = scmp.eq.s32.totalorder 0, 0
  // Predicated region
  $region18: #{port_state_lstm_forward.1} parent=0 // pred_check
    %p1613 = pneg %p1612
  $region19: #{port_state_lstm_forward.1} parent=0 // pred_check_branch
    %1615 = sbr.rel (%p1613) target = $region21
  $region20: #{port_state_lstm_forward.1} parent=0 // pred_region
    %v1616 = vld [vmem:[%s2] sm:$0x1]
    %v1618 = vlaneseq
    %v1619 = vshrl.u32 %v1618, 7
    %v1620 = vsub.s32 0, %v1619
    %v1621 = vrot.slane %v1616, %v1620
    %1622 = vrot.lane.b32.xlu0 %v1621, 96
    %v1623 = vpop.permute.xlu0 %1622
    %v1625 = vmul.f32 %v1611, %v1623
    %1627 = vrot.lane.b32.xlu0 %v1625, 32
    %v1628 = vpop.permute.xlu0 %1627
    %vm1630 = vcmask 254976
    %v1631 = vsel %vm1630, %v1628, 0.0
    %1632 = vadd.xlane.f32.xlu0 %v1631
    %v1633 = vpop.xlane.xlu0 %1632
    %v1634 = vld [vmem:[#allocation4] sm:$0x1]
    %v1636 = vlaneseq
    %v1637 = vshrl.u32 %v1636, 7
    %v1638 = vsub.s32 0, %v1637
    %v1639 = vrot.slane %v1634, %v1638
    %v1641 = vadd.f32 %v1633, %v1639
    %v1642 = vxor.u32 %v1641, 2147483648
    %v1643 = vmul.f32 %v1642, 1.442695
    %v1644 = vpow.pop %v1643
    %v1645 = vadd.f32 %v1644, 1.0
    %v1646 = vrcp.pop %v1645
    %v1647 = vmul.f32 1.0, %v1646
    %vm1648 = vcmask 1024
    %1649 = vst.msk [vmem:[%s4] sm:$0x3] %vm1648, %v1647
  $region21: #{port_state_lstm_forward.1} parent=0 // pred_fallthru
    _
  // Predicated region
  $region22: #{port_state_lstm_forward.1} parent=0 // pred_check
    _
  $region23: #{port_state_lstm_forward.1} parent=0 // pred_check_branch
    %1651 = sbr.rel (0) target = $region25
  $region24: #{port_state_lstm_forward.1} parent=0 // pred_region
    _
  $region25: #{port_state_lstm_forward.1} parent=0 // pred_fallthru
    _
  // Predicated region
  $region26: #{port_state_lstm_forward.1} parent=0 // pred_check
    _
  $region27: #{port_state_lstm_forward.1} parent=0 // pred_check_branch
    %1653 = sbr.rel (0) target = $region29
  $region28: #{port_state_lstm_forward.1} parent=0 // pred_region
    _
  $region29: #{port_state_lstm_forward.1} parent=0 // pred_fallthru
    _

</llo_original>
